<compile_context>
chip_gen: v6e
topology: v6e:2x2x1
jax: 0.10.0
libtpu: 0.0.40
codegen_flags: <defaults>
</compile_context>

<pallas_src>
import jax
import jax.numpy as jnp
from jax import lax
from jax.experimental import pallas as pl
from jax.experimental.pallas import tpu as pltpu


def _interp_matrix(out_size: int, in_size: int) -> jnp.ndarray:
    """Bilinear (align_corners=False) 1-D interpolation matrix (out_size, in_size)."""
    i = jnp.arange(out_size, dtype=jnp.float32)
    src = (i + 0.5) * (in_size / out_size) - 0.5
    src = jnp.clip(src, 0.0, in_size - 1)
    i0 = jnp.floor(src).astype(jnp.int32)
    i1 = jnp.minimum(i0 + 1, in_size - 1)
    frac = src - i0.astype(jnp.float32)
    m = jnp.zeros((out_size, in_size), jnp.float32)
    m = m.at[jnp.arange(out_size), i0].add(1.0 - frac)
    m = m.at[jnp.arange(out_size), i1].add(frac)
    return m


def _rup(v: int, m: int) -> int:
    return -(-v // m) * m


def _pick_tile_rows(h2: int, max_rows: int) -> int:
    """Largest multiple-of-8 divisor of h2 that is <= max_rows (else full h2)."""
    best = None
    for th in range(8, min(h2, max_rows) + 1, 8):
        if h2 % th == 0:
            best = th
    return best if best is not None else h2


def _pick_tile_cols(nout_pad: int, wcin: int, bpe: int, max_cols=None,
                    max_block_bytes: int = 8 << 20) -> int:
    """Largest multiple-of-128 divisor of nout_pad whose weight block fits the budget."""
    limit = nout_pad if max_cols is None else min(nout_pad, max_cols)
    best = 128
    tn = 128
    while tn <= limit:
        if nout_pad % tn == 0 and 3 * _rup(wcin, 8) * tn * bpe <= max_block_bytes:
            best = tn
        tn += 128
    return best


def _psp_upsample_kernel(x_ref, uh_ref, w_ref, bias_ref, alpha_ref, o_ref, rows_ref):
    # x_ref:    (1, H, W*Cin)       input rows for this batch element
    # uh_ref:   (1, 3, TH, H)       per-tile row-interp (+conv row-pad) matrices, one per dy tap
    # w_ref:    (3, W*Cin, TN)      fused width-upsample + 3x3-conv (+BN scale) weights (N tile)
    # bias_ref: (1, TN)             folded (conv bias + BN) bias, lane-tiled (N tile)
    # alpha_ref: SMEM (1,)          PReLU slope
    # o_ref:    (1, TH, TN)
    # rows_ref: VMEM (3, TH, W*Cin) first-stage result, reused across the N-tile (j) axis
    j = pl.program_id(2)

    @pl.when(j == 0)
    def _():
        xb = x_ref[0]                                                   # (H, WCin)
        for dy in range(3):                                             # static unroll
            r = jnp.dot(uh_ref[0, dy], xb, preferred_element_type=jnp.float32)
            rows_ref[dy] = r.astype(rows_ref.dtype)

    # 3 vertical conv taps; width upsample + horizontal taps + BN scale live in w_ref[dy].
    acc = jnp.dot(rows_ref[0], w_ref[0], preferred_element_type=jnp.float32)
    acc = acc + jnp.dot(rows_ref[1], w_ref[1], preferred_element_type=jnp.float32)
    acc = acc + jnp.dot(rows_ref[2], w_ref[2], preferred_element_type=jnp.float32)

    # Folded (conv bias + BN) add, then PReLU (f32 epilogue; safe on v5e).
    y = acc + bias_ref[...]
    a = alpha_ref[0]
    y = jnp.where(y > 0.0, y, a * y)
    o_ref[0] = y.astype(o_ref.dtype)


def psp_upsample_nhwc(x_nhwc, params, *, max_tile_rows=256, max_tile_cols=None,
                      compute_dtype=jnp.bfloat16):
    """x_nhwc: (B, H, W, Cin) float. Returns (B, 2H, 2W, Cout) float32 in NHWC."""
    w_hwio = jnp.asarray(params["conv_w"], jnp.float32)    # (3, 3, Cin, Cout)
    conv_b = jnp.asarray(params["conv_b"], jnp.float32)
    gamma = jnp.asarray(params["bn_gamma"], jnp.float32)
    beta = jnp.asarray(params["bn_beta"], jnp.float32)
    mean = jnp.asarray(params["bn_mean"], jnp.float32)
    var = jnp.asarray(params["bn_var"], jnp.float32)
    eps = params["bn_eps"]
    a_prelu = params["prelu_a"]

    B, H, W, Cin = x_nhwc.shape
    Cout = w_hwio.shape[-1]
    H2, W2 = 2 * H, 2 * W
    WCin = W * Cin
    NOUT = W2 * Cout
    NOUT_pad = _rup(NOUT, 128)                               # lane-dense output stores
    bpe = jnp.dtype(compute_dtype).itemsize

    # v7x megacore: with B == 1 make sure there are >= 2 parallel grid steps.
    eff_max_rows = max_tile_rows if B > 1 else min(max_tile_rows, max(8, H2 // 2))
    TH = _pick_tile_rows(H2, eff_max_rows)
    NT = H2 // TH
    TN = _pick_tile_cols(NOUT_pad, WCin, bpe, max_tile_cols)
    NJ = NOUT_pad // TN

    # Input with (W, Cin) fused into the lane dim.
    x = x_nhwc.reshape(B, H, WCin).astype(compute_dtype)

    # Row-interp matrix with zero rows at both ends (= the conv's vertical zero padding),
    # pre-sliced per (row tile, vertical tap) so every second-stage LHS is sublane-aligned.
    Uh = _interp_matrix(H2, H)
    Uh_pad = jnp.zeros((H2 + 2, H), jnp.float32).at[1:H2 + 1].set(Uh)
    uh_tiles = jnp.stack(
        [jnp.stack([Uh_pad[t * TH + dy:t * TH + dy + TH] for dy in range(3)], axis=0)
         for t in range(NT)], axis=0).astype(compute_dtype)            # (NT, 3, TH, H)

    # Fused width-upsample + horizontal conv taps (+ conv zero-pad columns) + BN scale:
    #   A[dy, w*Cin+ci, jo*Cout+co] = sum_dx Uw_pad[jo+dx, w] * conv_w[dy, dx, ci, co] * scale[co]
    Uw = _interp_matrix(W2, W)
    Uw_pad = jnp.zeros((W2 + 2, W), jnp.float32).at[1:W2 + 1].set(Uw)
    S = jnp.stack([Uw_pad[dx:dx + W2] for dx in range(3)], axis=0)     # (3, W2, W)
    inv_std = 1.0 / jnp.sqrt(var + eps)
    scale = gamma * inv_std                                            # (Cout,)
    w_scaled = w_hwio * scale[None, None, None, :]
    A = jnp.einsum('xjw,yxio->ywijo', S, w_scaled).reshape(3, WCin, NOUT)
    A = jnp.pad(A, ((0, 0), (0, 0), (0, NOUT_pad - NOUT))).astype(compute_dtype)

    # Folded bias (conv bias + BN), tiled across the lane dim; zero in the padded columns.
    bias = beta + (conv_b - mean) * scale                              # (Cout,)
    bias_tiled = jnp.pad(jnp.tile(bias, W2), (0, NOUT_pad - NOUT))
    bias_tiled = bias_tiled.reshape(1, NOUT_pad).astype(jnp.float32)

    alpha = jnp.full((1,), a_prelu, jnp.float32)                       # PReLU slope -> SMEM

    def _tile_bytes(lead, r, c, itemsize):
        return lead * _rup(r, 8) * _rup(c, 128) * itemsize

    def _vmem_limit(use_buffered):
        nbuf_x = 1 if use_buffered else 2
        nbuf_w = (1 if NJ == 1 else 2) if use_buffered else 2
        est = (nbuf_x * _tile_bytes(1, H, WCin, bpe)                   # x
               + 2 * _tile_bytes(3, TH, H, bpe)                        # uh
               + nbuf_w * _tile_bytes(3, WCin, TN, bpe)                # fused weights
               + nbuf_w * _tile_bytes(1, 1, TN, 4)                     # bias
               + 2 * _tile_bytes(1, TH, TN, 4)                         # out
               + _tile_bytes(3, TH, WCin, bpe))                        # rows scratch
        try:
            cap = pltpu.get_tpu_info().vmem_capacity_bytes
        except Exception:
            cap = 64 * 2 ** 20                                         # assume smallest (v7x)
        return int(min(max(8 << 20, est + est // 4), (cap * 5) // 8))

    def _bspec(shape, idx, mode):
        if mode is None:
            return pl.BlockSpec(shape, idx)
        return pl.BlockSpec(shape, idx, pipeline_mode=mode)

    def _run(use_buffered):
        x_mode = pl.Buffered(1) if use_buffered else None              # per-batch constant
        w_mode = (pl.Buffered(1) if NJ == 1 else None) if use_buffered else None
        grid_spec = pltpu.PrefetchScalarGridSpec(
            num_scalar_prefetch=0,
            grid=(B, NT, NJ),
            in_specs=[
                _bspec((1, H, WCin), lambda b, t, j: (b, 0, 0), x_mode),        # x
                _bspec((1, 3, TH, H), lambda b, t, j: (t, 0, 0, 0), None),      # uh tile
                _bspec((3, WCin, TN), lambda b, t, j: (0, 0, j), w_mode),       # fused weights
                _bspec((1, TN), lambda b, t, j: (0, j), w_mode),                # fused bias
                pl.BlockSpec(memory_space=pltpu.MemorySpace.SMEM),              # PReLU alpha
            ],
            out_specs=pl.BlockSpec((1, TH, TN), lambda b, t, j: (b, t, j)),
            scratch_shapes=[pltpu.VMEM((3, TH, WCin), compute_dtype)],
        )
        fn = pl.pallas_call(
            _psp_upsample_kernel,
            out_shape=jax.ShapeDtypeStruct((B, H2, NOUT_pad), jnp.float32),
            grid_spec=grid_spec,
            compiler_params=pltpu.CompilerParams(
                dimension_semantics=("parallel", "parallel", "arbitrary"),
                vmem_limit_bytes=_vmem_limit(use_buffered)),
        )
        return jax.block_until_ready(fn(x, uh_tiles, A, bias_tiled, alpha))

    try:
        out = _run(True)
    except Exception:
        # pipeline_mode=pl.Buffered(1) not supported on this jax version -> default buffering.
        out = _run(False)

    return out[..., :NOUT].reshape(B, H2, W2, Cout)


def psp_upsample(x_nchw, params, **kwargs):
    """NCHW wrapper matching the PyTorch module layout (B, Cin, H, W) -> (B, Cout, 2H, 2W)."""
    y = psp_upsample_nhwc(jnp.transpose(x_nchw, (0, 2, 3, 1)), params, **kwargs)
    return jnp.transpose(y, (0, 3, 1, 2))


def psp_upsample_reference(x_nchw, params):
    """Pure-JAX reference (same math) for correctness checking."""
    w_hwio = params["conv_w"]
    conv_b = params["conv_b"]
    gamma, beta = params["bn_gamma"], params["bn_beta"]
    mean, var, eps = params["bn_mean"], params["bn_var"], params["bn_eps"]
    a = params["prelu_a"]

    B, Cin, H, W = x_nchw.shape
    H2, W2 = 2 * H, 2 * W
    x = jnp.transpose(x_nchw, (0, 2, 3, 1)).astype(jnp.float32)

    uh = _interp_matrix(H2, H)
    uw = _interp_matrix(W2, W)
    p = jnp.einsum('Hh,bhwc,Ww->bHWc', uh, x, uw)

    y = lax.conv_general_dilated(
        p, w_hwio, window_strides=(1, 1), padding='SAME',
        dimension_numbers=('NHWC', 'HWIO', 'NHWC')) + conv_b
    y = (y - mean) / jnp.sqrt(var + eps) * gamma + beta
    y = jnp.where(y > 0, y, a * y)
    return jnp.transpose(y, (0, 3, 1, 2))


if __name__ == "__main__":
    key = jax.random.PRNGKey(0)
    B, Cin, Cout, H, W = 2, 4, 8, 16, 16

    kx, kw, kb = jax.random.split(key, 3)
    x = jax.random.normal(kx, (B, Cin, H, W), jnp.float32)

    params = dict(
        conv_w=0.1 * jax.random.normal(kw, (3, 3, Cin, Cout), jnp.float32),
        conv_b=0.05 * jax.random.normal(kb, (Cout,), jnp.float32),
        bn_gamma=1.0 + 0.1 * jnp.arange(Cout, dtype=jnp.float32),
        bn_beta=0.05 * jnp.arange(Cout, dtype=jnp.float32),
        bn_mean=0.01 * jnp.arange(Cout, dtype=jnp.float32),
        bn_var=1.0 + 0.02 * jnp.arange(Cout, dtype=jnp.float32),
        bn_eps=1e-5,
        prelu_a=0.25,
    )

    ref = jax.block_until_ready(psp_upsample_reference(x, params))

    # 1) f32, row-tiled (grid=(B,2,1)) — exercises the vertical-halo / row-tile path.
    out_rows = jax.block_until_ready(
        psp_upsample(x, params, max_tile_rows=16, compute_dtype=jnp.float32))
    assert out_rows.shape == (B, Cout, 2 * H, 2 * W), out_rows.shape
    assert jnp.allclose(out_rows, ref, rtol=1e-4, atol=1e-4), \
        float(jnp.max(jnp.abs(out_rows - ref)))

    # 2) f32, output-column-tiled weights (grid=(B,1,2)) — exercises the N-tiling and the
    #    rows-scratch reuse across the j axis.
    out_cols = jax.block_until_ready(
        psp_upsample(x, params, max_tile_cols=128, compute_dtype=jnp.float32))
    assert jnp.allclose(out_cols, ref, rtol=1e-4, atol=1e-4), \
        float(jnp.max(jnp.abs(out_cols - ref)))

    # 3) Default: bf16 MXU inputs, f32 accumulate + f32 epilogue (v6e/v7x fast path).
    out_bf16 = jax.block_until_ready(psp_upsample(x, params))
    assert jnp.allclose(out_bf16, ref, rtol=5e-2, atol=5e-2), \
        float(jnp.max(jnp.abs(out_bf16 - ref)))

    print("KERNEL_OK")
</pallas_src>

<mosaic_0001>
module attributes {stable_mosaic.version = 11 : i64} {
  func.func @_psp_upsample_kernel(%arg0: i32, %arg1: i32, %arg2: i32, %arg3: memref<1x16x64xf32, #tpu.memory_space<vmem>>, %arg4: memref<1x3x16x16xf32, #tpu.memory_space<vmem>>, %arg5: memref<3x64x256xf32, #tpu.memory_space<vmem>>, %arg6: memref<1x256xf32, #tpu.memory_space<vmem>>, %arg7: memref<1xf32, #tpu.memory_space<smem>>, %arg8: memref<1x16x256xf32, #tpu.memory_space<vmem>>, %arg9: memref<3x16x64xf32, #tpu.memory_space<vmem>>) attributes {dimension_semantics = [#tpu.dimension_semantics<parallel>, #tpu.dimension_semantics<parallel>, #tpu.dimension_semantics<arbitrary>], iteration_bounds = array<i64: 2, 2, 1>, scalar_prefetch = 0 : i64, scratch_operands = 1 : i64, tpu.core_type = #tpu.core_type<tc>, window_params = [{pipeline_mode = #tpu.pipeline_mode<synchronous>, transform_indices = @transform_0, window_bounds = array<i64: 1, 16, 64>}, {transform_indices = @transform_1, window_bounds = array<i64: 1, 3, 16, 16>}, {pipeline_mode = #tpu.pipeline_mode<synchronous>, transform_indices = @transform_2, window_bounds = array<i64: 3, 64, 256>}, {pipeline_mode = #tpu.pipeline_mode<synchronous>, transform_indices = @transform_3, window_bounds = array<i64: 1, 256>}, {transform_indices = @transform_4, window_bounds = array<i64: 1>}, {transform_indices = @transform_5, window_bounds = array<i64: 1, 16, 256>}]} {
    %c0_i32 = arith.constant 0 : i32
    %0 = arith.cmpi eq, %arg2, %c0_i32 : i32
    %1 = arith.extui %0 : i1 to i32
    %c0_i32_0 = arith.constant 0 : i32
    %2 = arith.cmpi ne, %1, %c0_i32_0 : i32
    scf.if %2 {
      %c0_25 = arith.constant 0 : index
      %c0_26 = arith.constant 0 : index
      %c0_27 = arith.constant 0 : index
      %32 = vector.load %arg3[%c0_25, %c0_26, %c0_27] : memref<1x16x64xf32, #tpu.memory_space<vmem>>, vector<1x16x64xf32>
      %33 = vector.shape_cast %32 : vector<1x16x64xf32> to vector<16x64xf32>
      %c0_28 = arith.constant 0 : index
      %c0_29 = arith.constant 0 : index
      %c0_30 = arith.constant 0 : index
      %c0_31 = arith.constant 0 : index
      %34 = vector.load %arg4[%c0_28, %c0_29, %c0_30, %c0_31] : memref<1x3x16x16xf32, #tpu.memory_space<vmem>>, vector<1x1x16x16xf32>
      %35 = vector.shape_cast %34 : vector<1x1x16x16xf32> to vector<16x16xf32>
      %cst_32 = arith.constant dense<0.000000e+00> : vector<16x64xf32>
      %36 = tpu.matmul %35, %33, %cst_32 {dimension_numbers = #tpu.dot_dimension_numbers<[1], [0], [0], [1], [0, 0, 1, 1], [], []>} : vector<16x16xf32>, vector<16x64xf32>, vector<16x64xf32> -> vector<16x64xf32>
      %c0_33 = arith.constant 0 : index
      %c0_34 = arith.constant 0 : index
      %c0_35 = arith.constant 0 : index
      %37 = vector.load %arg9[%c0_33, %c0_34, %c0_35] : memref<3x16x64xf32, #tpu.memory_space<vmem>>, vector<1x16x64xf32>
      %38 = vector.shape_cast %37 : vector<1x16x64xf32> to vector<16x64xf32>
      %39 = vector.shape_cast %36 : vector<16x64xf32> to vector<1x16x64xf32>
      tpu.vector_store %arg9[%c0_33, %c0_34, %c0_35], %39 {strides = array<i32>} : memref<3x16x64xf32, #tpu.memory_space<vmem>>, vector<1x16x64xf32>,
      %c0_36 = arith.constant 0 : index
      %c1_37 = arith.constant 1 : index
      %c0_38 = arith.constant 0 : index
      %c0_39 = arith.constant 0 : index
      %40 = vector.load %arg4[%c0_36, %c1_37, %c0_38, %c0_39] : memref<1x3x16x16xf32, #tpu.memory_space<vmem>>, vector<1x1x16x16xf32>
      %41 = vector.shape_cast %40 : vector<1x1x16x16xf32> to vector<16x16xf32>
      %cst_40 = arith.constant dense<0.000000e+00> : vector<16x64xf32>
      %42 = tpu.matmul %41, %33, %cst_40 {dimension_numbers = #tpu.dot_dimension_numbers<[1], [0], [0], [1], [0, 0, 1, 1], [], []>} : vector<16x16xf32>, vector<16x64xf32>, vector<16x64xf32> -> vector<16x64xf32>
      %c1_41 = arith.constant 1 : index
      %c0_42 = arith.constant 0 : index
      %c0_43 = arith.constant 0 : index
      %43 = vector.load %arg9[%c1_41, %c0_42, %c0_43] : memref<3x16x64xf32, #tpu.memory_space<vmem>>, vector<1x16x64xf32>
      %44 = vector.shape_cast %43 : vector<1x16x64xf32> to vector<16x64xf32>
      %45 = vector.shape_cast %42 : vector<16x64xf32> to vector<1x16x64xf32>
      tpu.vector_store %arg9[%c1_41, %c0_42, %c0_43], %45 {strides = array<i32>} : memref<3x16x64xf32, #tpu.memory_space<vmem>>, vector<1x16x64xf32>,
      %c0_44 = arith.constant 0 : index
      %c2_45 = arith.constant 2 : index
      %c0_46 = arith.constant 0 : index
      %c0_47 = arith.constant 0 : index
      %46 = vector.load %arg4[%c0_44, %c2_45, %c0_46, %c0_47] : memref<1x3x16x16xf32, #tpu.memory_space<vmem>>, vector<1x1x16x16xf32>
      %47 = vector.shape_cast %46 : vector<1x1x16x16xf32> to vector<16x16xf32>
      %cst_48 = arith.constant dense<0.000000e+00> : vector<16x64xf32>
      %48 = tpu.matmul %47, %33, %cst_48 {dimension_numbers = #tpu.dot_dimension_numbers<[1], [0], [0], [1], [0, 0, 1, 1], [], []>} : vector<16x16xf32>, vector<16x64xf32>, vector<16x64xf32> -> vector<16x64xf32>
      %c2_49 = arith.constant 2 : index
      %c0_50 = arith.constant 0 : index
      %c0_51 = arith.constant 0 : index
      %49 = vector.load %arg9[%c2_49, %c0_50, %c0_51] : memref<3x16x64xf32, #tpu.memory_space<vmem>>, vector<1x16x64xf32>
      %50 = vector.shape_cast %49 : vector<1x16x64xf32> to vector<16x64xf32>
      %51 = vector.shape_cast %48 : vector<16x64xf32> to vector<1x16x64xf32>
      tpu.vector_store %arg9[%c2_49, %c0_50, %c0_51], %51 {strides = array<i32>} : memref<3x16x64xf32, #tpu.memory_space<vmem>>, vector<1x16x64xf32>,
    } else {
    }
    %c0 = arith.constant 0 : index
    %c0_1 = arith.constant 0 : index
    %c0_2 = arith.constant 0 : index
    %3 = vector.load %arg9[%c0, %c0_1, %c0_2] : memref<3x16x64xf32, #tpu.memory_space<vmem>>, vector<1x16x64xf32>
    %4 = vector.shape_cast %3 : vector<1x16x64xf32> to vector<16x64xf32>
    %c0_3 = arith.constant 0 : index
    %c0_4 = arith.constant 0 : index
    %c0_5 = arith.constant 0 : index
    %5 = vector.load %arg5[%c0_3, %c0_4, %c0_5] : memref<3x64x256xf32, #tpu.memory_space<vmem>>, vector<1x64x256xf32>
    %6 = vector.shape_cast %5 : vector<1x64x256xf32> to vector<64x256xf32>
    %cst = arith.constant dense<0.000000e+00> : vector<16x256xf32>
    %7 = tpu.matmul %4, %6, %cst {dimension_numbers = #tpu.dot_dimension_numbers<[1], [0], [0], [1], [0, 0, 1, 1], [], []>} : vector<16x64xf32>, vector<64x256xf32>, vector<16x256xf32> -> vector<16x256xf32>
    %c1 = arith.constant 1 : index
    %c0_6 = arith.constant 0 : index
    %c0_7 = arith.constant 0 : index
    %8 = vector.load %arg9[%c1, %c0_6, %c0_7] : memref<3x16x64xf32, #tpu.memory_space<vmem>>, vector<1x16x64xf32>
    %9 = vector.shape_cast %8 : vector<1x16x64xf32> to vector<16x64xf32>
    %c1_8 = arith.constant 1 : index
    %c0_9 = arith.constant 0 : index
    %c0_10 = arith.constant 0 : index
    %10 = vector.load %arg5[%c1_8, %c0_9, %c0_10] : memref<3x64x256xf32, #tpu.memory_space<vmem>>, vector<1x64x256xf32>
    %11 = vector.shape_cast %10 : vector<1x64x256xf32> to vector<64x256xf32>
    %cst_11 = arith.constant dense<0.000000e+00> : vector<16x256xf32>
    %12 = tpu.matmul %9, %11, %cst_11 {dimension_numbers = #tpu.dot_dimension_numbers<[1], [0], [0], [1], [0, 0, 1, 1], [], []>} : vector<16x64xf32>, vector<64x256xf32>, vector<16x256xf32> -> vector<16x256xf32>
    %13 = arith.addf %7, %12 : vector<16x256xf32>
    %c2 = arith.constant 2 : index
    %c0_12 = arith.constant 0 : index
    %c0_13 = arith.constant 0 : index
    %14 = vector.load %arg9[%c2, %c0_12, %c0_13] : memref<3x16x64xf32, #tpu.memory_space<vmem>>, vector<1x16x64xf32>
    %15 = vector.shape_cast %14 : vector<1x16x64xf32> to vector<16x64xf32>
    %c2_14 = arith.constant 2 : index
    %c0_15 = arith.constant 0 : index
    %c0_16 = arith.constant 0 : index
    %16 = vector.load %arg5[%c2_14, %c0_15, %c0_16] : memref<3x64x256xf32, #tpu.memory_space<vmem>>, vector<1x64x256xf32>
    %17 = vector.shape_cast %16 : vector<1x64x256xf32> to vector<64x256xf32>
    %cst_17 = arith.constant dense<0.000000e+00> : vector<16x256xf32>
    %18 = tpu.matmul %15, %17, %cst_17 {dimension_numbers = #tpu.dot_dimension_numbers<[1], [0], [0], [1], [0, 0, 1, 1], [], []>} : vector<16x64xf32>, vector<64x256xf32>, vector<16x256xf32> -> vector<16x256xf32>
    %19 = arith.addf %13, %18 : vector<16x256xf32>
    %c0_18 = arith.constant 0 : index
    %c0_19 = arith.constant 0 : index
    %20 = vector.load %arg6[%c0_18, %c0_19] : memref<1x256xf32, #tpu.memory_space<vmem>>, vector<1x256xf32>
    %21 = vector.broadcast %20 : vector<1x256xf32> to vector<16x256xf32>
    %22 = arith.addf %19, %21 : vector<16x256xf32>
    %c0_20 = arith.constant 0 : index
    %23 = memref.load %arg7[%c0_20] : memref<1xf32, #tpu.memory_space<smem>>
    %cst_21 = arith.constant 0.000000e+00 : f32
    %24 = vector.broadcast %cst_21 : f32 to vector<16x256xf32>
    %25 = arith.cmpf ogt, %22, %24 : vector<16x256xf32>
    %26 = vector.broadcast %23 : f32 to vector<16x256xf32>
    %27 = arith.mulf %26, %22 : vector<16x256xf32>
    %28 = arith.select %25, %22, %27 : vector<16x256xi1>, vector<16x256xf32>
    %c0_22 = arith.constant 0 : index
    %c0_23 = arith.constant 0 : index
    %c0_24 = arith.constant 0 : index
    %29 = vector.load %arg8[%c0_22, %c0_23, %c0_24] : memref<1x16x256xf32, #tpu.memory_space<vmem>>, vector<1x16x256xf32>
    %30 = vector.shape_cast %29 : vector<1x16x256xf32> to vector<16x256xf32>
    %31 = vector.shape_cast %28 : vector<16x256xf32> to vector<1x16x256xf32>
    tpu.vector_store %arg8[%c0_22, %c0_23, %c0_24], %31 {strides = array<i32>} : memref<1x16x256xf32, #tpu.memory_space<vmem>>, vector<1x16x256xf32>,
    return
  }
  func.func @transform_0(%arg0: i32, %arg1: i32, %arg2: i32) -> (i32, i32, i32) {
    %c0_i32 = arith.constant 0 : i32
    %c0_i32_0 = arith.constant 0 : i32
    %c0_i32_1 = arith.constant 0 : i32
    return %arg0, %c0_i32, %c0_i32_0 : i32, i32, i32
  }
  func.func @transform_1(%arg0: i32, %arg1: i32, %arg2: i32) -> (i32, i32, i32, i32) {
    %c0_i32 = arith.constant 0 : i32
    %c0_i32_0 = arith.constant 0 : i32
    %c0_i32_1 = arith.constant 0 : i32
    %c0_i32_2 = arith.constant 0 : i32
    return %arg1, %c0_i32, %c0_i32_0, %c0_i32_1 : i32, i32, i32, i32
  }
  func.func @transform_2(%arg0: i32, %arg1: i32, %arg2: i32) -> (i32, i32, i32) {
    %c0_i32 = arith.constant 0 : i32
    %c0_i32_0 = arith.constant 0 : i32
    %c0_i32_1 = arith.constant 0 : i32
    return %c0_i32, %c0_i32_0, %arg2 : i32, i32, i32
  }
  func.func @transform_3(%arg0: i32, %arg1: i32, %arg2: i32) -> (i32, i32) {
    %c0_i32 = arith.constant 0 : i32
    %c0_i32_0 = arith.constant 0 : i32
    return %c0_i32, %arg2 : i32, i32
  }
  func.func @transform_4(%arg0: i32, %arg1: i32, %arg2: i32) -> i32 {
    %c0_i32 = arith.constant 0 : i32
    %c0_i32_0 = arith.constant 0 : i32
    return %c0_i32 : i32
  }
  func.func @transform_5(%arg0: i32, %arg1: i32, %arg2: i32) -> (i32, i32, i32) {
    %c0_i32 = arith.constant 0 : i32
    return %arg0, %arg1, %arg2 : i32, i32, i32
  }
}

module attributes {stable_mosaic.version = 11 : i64} {
  func.func @_psp_upsample_kernel(%arg0: i32, %arg1: i32, %arg2: i32, %arg3: memref<1x16x64xf32, #tpu.memory_space<vmem>>, %arg4: memref<1x3x16x16xf32, #tpu.memory_space<vmem>>, %arg5: memref<3x64x256xf32, #tpu.memory_space<vmem>>, %arg6: memref<1x256xf32, #tpu.memory_space<vmem>>, %arg7: memref<1xf32, #tpu.memory_space<smem>>, %arg8: memref<1x16x256xf32, #tpu.memory_space<vmem>>, %arg9: memref<3x16x64xf32, #tpu.memory_space<vmem>>) attributes {dimension_semantics = [#tpu.dimension_semantics<parallel>, #tpu.dimension_semantics<parallel>, #tpu.dimension_semantics<arbitrary>], iteration_bounds = array<i64: 2, 2, 1>, scalar_prefetch = 0 : i64, scratch_operands = 1 : i64, tpu.core_type = #tpu.core_type<tc>, window_params = [{transform_indices = @transform_0, window_bounds = array<i64: 1, 16, 64>}, {transform_indices = @transform_1, window_bounds = array<i64: 1, 3, 16, 16>}, {transform_indices = @transform_2, window_bounds = array<i64: 3, 64, 256>}, {transform_indices = @transform_3, window_bounds = array<i64: 1, 256>}, {transform_indices = @transform_4, window_bounds = array<i64: 1>}, {transform_indices = @transform_5, window_bounds = array<i64: 1, 16, 256>}]} {
    %c0_i32 = arith.constant 0 : i32
    %0 = arith.cmpi eq, %arg2, %c0_i32 : i32
    %1 = arith.extui %0 : i1 to i32
    %c0_i32_0 = arith.constant 0 : i32
    %2 = arith.cmpi ne, %1, %c0_i32_0 : i32
    scf.if %2 {
      %c0_25 = arith.constant 0 : index
      %c0_26 = arith.constant 0 : index
      %c0_27 = arith.constant 0 : index
      %32 = vector.load %arg3[%c0_25, %c0_26, %c0_27] : memref<1x16x64xf32, #tpu.memory_space<vmem>>, vector<1x16x64xf32>
      %33 = vector.shape_cast %32 : vector<1x16x64xf32> to vector<16x64xf32>
      %c0_28 = arith.constant 0 : index
      %c0_29 = arith.constant 0 : index
      %c0_30 = arith.constant 0 : index
      %c0_31 = arith.constant 0 : index
      %34 = vector.load %arg4[%c0_28, %c0_29, %c0_30, %c0_31] : memref<1x3x16x16xf32, #tpu.memory_space<vmem>>, vector<1x1x16x16xf32>
      %35 = vector.shape_cast %34 : vector<1x1x16x16xf32> to vector<16x16xf32>
      %cst_32 = arith.constant dense<0.000000e+00> : vector<16x64xf32>
      %36 = tpu.matmul %35, %33, %cst_32 {dimension_numbers = #tpu.dot_dimension_numbers<[1], [0], [0], [1], [0, 0, 1, 1], [], []>} : vector<16x16xf32>, vector<16x64xf32>, vector<16x64xf32> -> vector<16x64xf32>
      %c0_33 = arith.constant 0 : index
      %c0_34 = arith.constant 0 : index
      %c0_35 = arith.constant 0 : index
      %37 = vector.load %arg9[%c0_33, %c0_34, %c0_35] : memref<3x16x64xf32, #tpu.memory_space<vmem>>, vector<1x16x64xf32>
      %38 = vector.shape_cast %37 : vector<1x16x64xf32> to vector<16x64xf32>
      %39 = vector.shape_cast %36 : vector<16x64xf32> to vector<1x16x64xf32>
      tpu.vector_store %arg9[%c0_33, %c0_34, %c0_35], %39 {strides = array<i32>} : memref<3x16x64xf32, #tpu.memory_space<vmem>>, vector<1x16x64xf32>,
      %c0_36 = arith.constant 0 : index
      %c1_37 = arith.constant 1 : index
      %c0_38 = arith.constant 0 : index
      %c0_39 = arith.constant 0 : index
      %40 = vector.load %arg4[%c0_36, %c1_37, %c0_38, %c0_39] : memref<1x3x16x16xf32, #tpu.memory_space<vmem>>, vector<1x1x16x16xf32>
      %41 = vector.shape_cast %40 : vector<1x1x16x16xf32> to vector<16x16xf32>
      %cst_40 = arith.constant dense<0.000000e+00> : vector<16x64xf32>
      %42 = tpu.matmul %41, %33, %cst_40 {dimension_numbers = #tpu.dot_dimension_numbers<[1], [0], [0], [1], [0, 0, 1, 1], [], []>} : vector<16x16xf32>, vector<16x64xf32>, vector<16x64xf32> -> vector<16x64xf32>
      %c1_41 = arith.constant 1 : index
      %c0_42 = arith.constant 0 : index
      %c0_43 = arith.constant 0 : index
      %43 = vector.load %arg9[%c1_41, %c0_42, %c0_43] : memref<3x16x64xf32, #tpu.memory_space<vmem>>, vector<1x16x64xf32>
      %44 = vector.shape_cast %43 : vector<1x16x64xf32> to vector<16x64xf32>
      %45 = vector.shape_cast %42 : vector<16x64xf32> to vector<1x16x64xf32>
      tpu.vector_store %arg9[%c1_41, %c0_42, %c0_43], %45 {strides = array<i32>} : memref<3x16x64xf32, #tpu.memory_space<vmem>>, vector<1x16x64xf32>,
      %c0_44 = arith.constant 0 : index
      %c2_45 = arith.constant 2 : index
      %c0_46 = arith.constant 0 : index
      %c0_47 = arith.constant 0 : index
      %46 = vector.load %arg4[%c0_44, %c2_45, %c0_46, %c0_47] : memref<1x3x16x16xf32, #tpu.memory_space<vmem>>, vector<1x1x16x16xf32>
      %47 = vector.shape_cast %46 : vector<1x1x16x16xf32> to vector<16x16xf32>
      %cst_48 = arith.constant dense<0.000000e+00> : vector<16x64xf32>
      %48 = tpu.matmul %47, %33, %cst_48 {dimension_numbers = #tpu.dot_dimension_numbers<[1], [0], [0], [1], [0, 0, 1, 1], [], []>} : vector<16x16xf32>, vector<16x64xf32>, vector<16x64xf32> -> vector<16x64xf32>
      %c2_49 = arith.constant 2 : index
      %c0_50 = arith.constant 0 : index
      %c0_51 = arith.constant 0 : index
      %49 = vector.load %arg9[%c2_49, %c0_50, %c0_51] : memref<3x16x64xf32, #tpu.memory_space<vmem>>, vector<1x16x64xf32>
      %50 = vector.shape_cast %49 : vector<1x16x64xf32> to vector<16x64xf32>
      %51 = vector.shape_cast %48 : vector<16x64xf32> to vector<1x16x64xf32>
      tpu.vector_store %arg9[%c2_49, %c0_50, %c0_51], %51 {strides = array<i32>} : memref<3x16x64xf32, #tpu.memory_space<vmem>>, vector<1x16x64xf32>,
    } else {
    }
    %c0 = arith.constant 0 : index
    %c0_1 = arith.constant 0 : index
    %c0_2 = arith.constant 0 : index
    %3 = vector.load %arg9[%c0, %c0_1, %c0_2] : memref<3x16x64xf32, #tpu.memory_space<vmem>>, vector<1x16x64xf32>
    %4 = vector.shape_cast %3 : vector<1x16x64xf32> to vector<16x64xf32>
    %c0_3 = arith.constant 0 : index
    %c0_4 = arith.constant 0 : index
    %c0_5 = arith.constant 0 : index
    %5 = vector.load %arg5[%c0_3, %c0_4, %c0_5] : memref<3x64x256xf32, #tpu.memory_space<vmem>>, vector<1x64x256xf32>
    %6 = vector.shape_cast %5 : vector<1x64x256xf32> to vector<64x256xf32>
    %cst = arith.constant dense<0.000000e+00> : vector<16x256xf32>
    %7 = tpu.matmul %4, %6, %cst {dimension_numbers = #tpu.dot_dimension_numbers<[1], [0], [0], [1], [0, 0, 1, 1], [], []>} : vector<16x64xf32>, vector<64x256xf32>, vector<16x256xf32> -> vector<16x256xf32>
    %c1 = arith.constant 1 : index
    %c0_6 = arith.constant 0 : index
    %c0_7 = arith.constant 0 : index
    %8 = vector.load %arg9[%c1, %c0_6, %c0_7] : memref<3x16x64xf32, #tpu.memory_space<vmem>>, vector<1x16x64xf32>
    %9 = vector.shape_cast %8 : vector<1x16x64xf32> to vector<16x64xf32>
    %c1_8 = arith.constant 1 : index
    %c0_9 = arith.constant 0 : index
    %c0_10 = arith.constant 0 : index
    %10 = vector.load %arg5[%c1_8, %c0_9, %c0_10] : memref<3x64x256xf32, #tpu.memory_space<vmem>>, vector<1x64x256xf32>
    %11 = vector.shape_cast %10 : vector<1x64x256xf32> to vector<64x256xf32>
    %cst_11 = arith.constant dense<0.000000e+00> : vector<16x256xf32>
    %12 = tpu.matmul %9, %11, %cst_11 {dimension_numbers = #tpu.dot_dimension_numbers<[1], [0], [0], [1], [0, 0, 1, 1], [], []>} : vector<16x64xf32>, vector<64x256xf32>, vector<16x256xf32> -> vector<16x256xf32>
    %13 = arith.addf %7, %12 : vector<16x256xf32>
    %c2 = arith.constant 2 : index
    %c0_12 = arith.constant 0 : index
    %c0_13 = arith.constant 0 : index
    %14 = vector.load %arg9[%c2, %c0_12, %c0_13] : memref<3x16x64xf32, #tpu.memory_space<vmem>>, vector<1x16x64xf32>
    %15 = vector.shape_cast %14 : vector<1x16x64xf32> to vector<16x64xf32>
    %c2_14 = arith.constant 2 : index
    %c0_15 = arith.constant 0 : index
    %c0_16 = arith.constant 0 : index
    %16 = vector.load %arg5[%c2_14, %c0_15, %c0_16] : memref<3x64x256xf32, #tpu.memory_space<vmem>>, vector<1x64x256xf32>
    %17 = vector.shape_cast %16 : vector<1x64x256xf32> to vector<64x256xf32>
    %cst_17 = arith.constant dense<0.000000e+00> : vector<16x256xf32>
    %18 = tpu.matmul %15, %17, %cst_17 {dimension_numbers = #tpu.dot_dimension_numbers<[1], [0], [0], [1], [0, 0, 1, 1], [], []>} : vector<16x64xf32>, vector<64x256xf32>, vector<16x256xf32> -> vector<16x256xf32>
    %19 = arith.addf %13, %18 : vector<16x256xf32>
    %c0_18 = arith.constant 0 : index
    %c0_19 = arith.constant 0 : index
    %20 = vector.load %arg6[%c0_18, %c0_19] : memref<1x256xf32, #tpu.memory_space<vmem>>, vector<1x256xf32>
    %21 = vector.broadcast %20 : vector<1x256xf32> to vector<16x256xf32>
    %22 = arith.addf %19, %21 : vector<16x256xf32>
    %c0_20 = arith.constant 0 : index
    %23 = memref.load %arg7[%c0_20] : memref<1xf32, #tpu.memory_space<smem>>
    %cst_21 = arith.constant 0.000000e+00 : f32
    %24 = vector.broadcast %cst_21 : f32 to vector<16x256xf32>
    %25 = arith.cmpf ogt, %22, %24 : vector<16x256xf32>
    %26 = vector.broadcast %23 : f32 to vector<16x256xf32>
    %27 = arith.mulf %26, %22 : vector<16x256xf32>
    %28 = arith.select %25, %22, %27 : vector<16x256xi1>, vector<16x256xf32>
    %c0_22 = arith.constant 0 : index
    %c0_23 = arith.constant 0 : index
    %c0_24 = arith.constant 0 : index
    %29 = vector.load %arg8[%c0_22, %c0_23, %c0_24] : memref<1x16x256xf32, #tpu.memory_space<vmem>>, vector<1x16x256xf32>
    %30 = vector.shape_cast %29 : vector<1x16x256xf32> to vector<16x256xf32>
    %31 = vector.shape_cast %28 : vector<16x256xf32> to vector<1x16x256xf32>
    tpu.vector_store %arg8[%c0_22, %c0_23, %c0_24], %31 {strides = array<i32>} : memref<1x16x256xf32, #tpu.memory_space<vmem>>, vector<1x16x256xf32>,
    return
  }
  func.func @transform_0(%arg0: i32, %arg1: i32, %arg2: i32) -> (i32, i32, i32) {
    %c0_i32 = arith.constant 0 : i32
    %c0_i32_0 = arith.constant 0 : i32
    %c0_i32_1 = arith.constant 0 : i32
    return %arg0, %c0_i32, %c0_i32_0 : i32, i32, i32
  }
  func.func @transform_1(%arg0: i32, %arg1: i32, %arg2: i32) -> (i32, i32, i32, i32) {
    %c0_i32 = arith.constant 0 : i32
    %c0_i32_0 = arith.constant 0 : i32
    %c0_i32_1 = arith.constant 0 : i32
    %c0_i32_2 = arith.constant 0 : i32
    return %arg1, %c0_i32, %c0_i32_0, %c0_i32_1 : i32, i32, i32, i32
  }
  func.func @transform_2(%arg0: i32, %arg1: i32, %arg2: i32) -> (i32, i32, i32) {
    %c0_i32 = arith.constant 0 : i32
    %c0_i32_0 = arith.constant 0 : i32
    %c0_i32_1 = arith.constant 0 : i32
    return %c0_i32, %c0_i32_0, %arg2 : i32, i32, i32
  }
  func.func @transform_3(%arg0: i32, %arg1: i32, %arg2: i32) -> (i32, i32) {
    %c0_i32 = arith.constant 0 : i32
    %c0_i32_0 = arith.constant 0 : i32
    return %c0_i32, %arg2 : i32, i32
  }
  func.func @transform_4(%arg0: i32, %arg1: i32, %arg2: i32) -> i32 {
    %c0_i32 = arith.constant 0 : i32
    %c0_i32_0 = arith.constant 0 : i32
    return %c0_i32 : i32
  }
  func.func @transform_5(%arg0: i32, %arg1: i32, %arg2: i32) -> (i32, i32, i32) {
    %c0_i32 = arith.constant 0 : i32
    return %arg0, %arg1, %arg2 : i32, i32, i32
  }
}

</mosaic_0001>

<llo_original>
// kernel: tpu_custom_call.1
$region0: #{tpu_custom_call.1}
  #allocation0 [shape = 'u32[]', space=smem, size = 0x4, offset = 0x4, fixed_abs, tag = 'smem constant byte address 0x4 - core index']
  #allocation1 [shape = 'u32[144,128]{1,0:T(1,128)}', space=vmem, size = 0x12000, scoped, tag = 'internal scratch']
  #allocation2 [shape = 'f32[3,16,64]{2,1,0:T(8,128)}', space=vmem, size = 0x6000, scoped, tag = 'scratch operand']
  #allocation3 [shape = 'f32[1]{0:T(128)S(6)}', space=smem, size = 0x200, scoped, tag = 'scoped memory for tpu_custom_call.1']
  %s0 = inlined_call_operand.hbm [shape: f32[2,16,64], index: 0, kind: input, shape index: {}]
  %s1 = inlined_call_operand.hbm [shape: f32[2,3,16,16], index: 1, kind: input, shape index: {}]
  %s2 = inlined_call_operand.hbm [shape: f32[3,64,256], index: 2, kind: input, shape index: {}]
  %s3 = inlined_call_operand.vmem [shape: f32[1,256], index: 3, kind: input, shape index: {}]
  %s4 = inlined_call_operand.<no memory space> [shape: f32[1], index: 4, kind: input, shape index: {}]
  %s5 = inlined_call_operand.hbm [shape: f32[2,32,256], index: 5, kind: output, shape index: {}]
  %s6 = sld [smem:[#allocation0]]
  $region69: #{tpu_custom_call.1} parent=0
    _
  %s8 = ssub.s32 1, %s6
  %s9 = scalar_select 0, %s8, %s6
  %10 = sst [smem:[#allocation3]] %s4
  $region1: #{tpu_custom_call.1} parent=0
    #allocation4 [shape = 'u8[8192]{0}', space=vmem, size = 0x2000, scoped, tag = 'input window, operand 0, single buffered']
    #allocation5 [shape = 's32[2]{0}', space=sflag, size = 0x8, scoped, tag = 'scoped memory for tpu_custom_call.1']
    #allocation6 [shape = 's32[2]{0}', space=sflag, size = 0x8, scoped, tag = 'scoped memory for tpu_custom_call.1']
    #allocation7 [shape = 'u8[49152]{0}', space=vmem, size = 0xc000, scoped, tag = 'input window, operand 1']
    #allocation8 [shape = 's32[2]{0}', space=sflag, size = 0x8, scoped, tag = 'scoped memory for tpu_custom_call.1']
    #allocation9 [shape = 'u8[196608]{0}', space=vmem, size = 0x30000, scoped, tag = 'input window, operand 2, single buffered']
    #allocation10 [shape = 'u8[32768]{0}', space=vmem, size = 0x8000, scoped, tag = 'output window, operand 0']
    %11 = vsyncpa [#allocation5], 0
    %12 = vsyncpa [#allocation8], 0
    %s13 = scalar_lea.sflag [#allocation8], 1
    %14 = vsyncpa %s13, 0
    %15 = vsyncpa [#allocation6], 0
    %s16 = scalar_lea.sflag [#allocation6], 1
    %17 = vsyncpa %s16, 0
    loop: start=0, step=1, limit=6
    $region2: #{tpu_custom_call.1} parent=1 // loop_pre_header
      _
    $region3: #{tpu_custom_call.1} parent=1 // loop_header
      %s19 = sphi 0, %s23
      %p20 = scmp.ge.s32.totalorder %s19, 6
      %s26 = sphi 0, %s45
      %s27 = sphi 0, %s41
      %s28 = sphi 0, %s37
      %s29 = sphi 0, %s26
      %s30 = sphi 0, %s27
      %s31 = sphi 0, %s28
      %s32 = sphi 0, %s29
      %s33 = sphi 0, %s30
      %s34 = sphi 0, %s31
      %s48 = sphi 0, %s50
      %s51 = sphi 0, %s48
      %s52 = sphi 0, %s51
      %s68 = sphi 0, %s52
      %s74 = sphi 0, %s76
      %s77 = sphi 0, %s74
      %s78 = sphi 0, %s77
      %s94 = sphi 0, %s78
      %s100 = sphi 0, %s102
      %s103 = sphi 0, %s100
      %s104 = sphi 0, %s103
      %s120 = sphi 0, %s104
      %s126 = sphi 0, %s128
      %s129 = sphi 0, %s126
      %s130 = sphi 0, %s129
      %s146 = sphi 0, %s130
      %s150 = sphi 0, %s150
      %s152 = sphi 0, %s150
      %s153 = sphi 0, %s152
      %s167 = sphi 0, %s153
      %s177 = sphi 0, %s179
      %s180 = sphi 0, %s177
      %s181 = sphi 0, %s180
      %s197 = sphi 0, %s181
    $region4: #{tpu_custom_call.1} parent=1 // loop_header_branch
      %22 = sbr.rel (%p20) target = $region8
    $region5: #{tpu_custom_call.1} parent=1 // loop_body
      %s24 = ssub.s32 %s19, 1
      %s25 = ssub.s32 %s19, 2
      %s35 = sadd.s32 1, %s28
      %p36 = scmp.ge.s32.totalorder %s35, 1
      %s37 = scalar_select %p36, 0, %s35
      %s38 = sadd.s32 1, %s27
      %s39 = scalar_select %p36, %s38, %s27
      %p40 = scmp.ge.s32.totalorder %s39, 2
      %s41 = scalar_select %p40, 0, %s39
      %s42 = sadd.s32 1, %s26
      %s43 = scalar_select %p40, %s42, %s26
      %p44 = scmp.ge.s32.totalorder %s43, 2
      %s45 = scalar_select %p44, 0, %s43
      %s46 = ssub.s32 %s26, %s45
      %p47 = scmp.eq.s32.totalorder %s46, 0
      %s49 = sadd.s32 %s48, 1
      %s50 = scalar_select %p47, %s48, %s49
      %p53 = pneg %p47
      %p54 = scmp.eq.s32.totalorder %s19, 3
      %p55 = por %p53, %p54
      %p56 = scmp.ne.s32.totalorder %s48, %s51
      %p57 = scmp.eq.s32.totalorder %s19, 0
      %p58 = por %p56, %p57
      %p59 = scmp.ne.s32.totalorder %s48, %s51
      %p60 = scmp.eq.s32.totalorder %s24, 3
      %p61 = por %p59, %p60
      %p62 = scmp.ne.s32.totalorder %s51, %s52
      %p63 = scmp.eq.s32.totalorder %s24, 0
      %p64 = por %p62, %p63
      %p65 = scmp.ne.s32.totalorder %s51, %s52
      %p66 = scmp.eq.s32.totalorder %s25, 3
      %p67 = por %p65, %p66
      %p69 = scmp.ne.s32.totalorder %s52, %s68
      %p70 = scmp.eq.s32.totalorder %s25, 0
      %p71 = por %p69, %p70
      %s72 = ssub.s32 %s27, %s41
      %p73 = scmp.eq.s32.totalorder %s72, 0
      %s75 = sadd.s32 %s74, 1
      %s76 = scalar_select %p73, %s74, %s75
      %p79 = pneg %p73
      %p80 = scmp.eq.s32.totalorder %s19, 3
      %p81 = por %p79, %p80
      %p82 = scmp.ne.s32.totalorder %s74, %s77
      %p83 = scmp.eq.s32.totalorder %s19, 0
      %p84 = por %p82, %p83
      %p85 = scmp.ne.s32.totalorder %s74, %s77
      %p86 = scmp.eq.s32.totalorder %s24, 3
      %p87 = por %p85, %p86
      %p88 = scmp.ne.s32.totalorder %s77, %s78
      %p89 = scmp.eq.s32.totalorder %s24, 0
      %p90 = por %p88, %p89
      %p91 = scmp.ne.s32.totalorder %s77, %s78
      %p92 = scmp.eq.s32.totalorder %s25, 3
      %p93 = por %p91, %p92
      %p95 = scmp.ne.s32.totalorder %s78, %s94
      %p96 = scmp.eq.s32.totalorder %s25, 0
      %p97 = por %p95, %p96
      %s98 = ssub.s32 %s28, %s37
      %p99 = scmp.eq.s32.totalorder %s98, 0
      %s101 = sadd.s32 %s100, 1
      %s102 = scalar_select %p99, %s100, %s101
      %p105 = pneg %p99
      %p106 = scmp.eq.s32.totalorder %s19, 3
      %p107 = por %p105, %p106
      %p108 = scmp.ne.s32.totalorder %s100, %s103
      %p109 = scmp.eq.s32.totalorder %s19, 0
      %p110 = por %p108, %p109
      %p111 = scmp.ne.s32.totalorder %s100, %s103
      %p112 = scmp.eq.s32.totalorder %s24, 3
      %p113 = por %p111, %p112
      %p114 = scmp.ne.s32.totalorder %s103, %s104
      %p115 = scmp.eq.s32.totalorder %s24, 0
      %p116 = por %p114, %p115
      %p117 = scmp.ne.s32.totalorder %s103, %s104
      %p118 = scmp.eq.s32.totalorder %s25, 3
      %p119 = por %p117, %p118
      %p121 = scmp.ne.s32.totalorder %s104, %s120
      %p122 = scmp.eq.s32.totalorder %s25, 0
      %p123 = por %p121, %p122
      %s124 = ssub.s32 %s28, %s37
      %p125 = scmp.eq.s32.totalorder %s124, 0
      %s127 = sadd.s32 %s126, 1
      %s128 = scalar_select %p125, %s126, %s127
      %p131 = pneg %p125
      %p132 = scmp.eq.s32.totalorder %s19, 3
      %p133 = por %p131, %p132
      %p134 = scmp.ne.s32.totalorder %s126, %s129
      %p135 = scmp.eq.s32.totalorder %s19, 0
      %p136 = por %p134, %p135
      %p137 = scmp.ne.s32.totalorder %s126, %s129
      %p138 = scmp.eq.s32.totalorder %s24, 3
      %p139 = por %p137, %p138
      %p140 = scmp.ne.s32.totalorder %s129, %s130
      %p141 = scmp.eq.s32.totalorder %s24, 0
      %p142 = por %p140, %p141
      %p143 = scmp.ne.s32.totalorder %s129, %s130
      %p144 = scmp.eq.s32.totalorder %s25, 3
      %p145 = por %p143, %p144
      %p147 = scmp.ne.s32.totalorder %s130, %s146
      %p148 = scmp.eq.s32.totalorder %s25, 0
      %p149 = por %p147, %p148
      %s151 = sadd.s32 %s150, 1
      %p154 = scmp.eq.s32.totalorder %s19, 3
      %p155 = scmp.ne.s32.totalorder %s150, %s152
      %p156 = scmp.eq.s32.totalorder %s19, 0
      %p157 = por %p155, %p156
      %p158 = scmp.ne.s32.totalorder %s150, %s152
      %p159 = scmp.eq.s32.totalorder %s24, 3
      %p160 = por %p158, %p159
      %p161 = scmp.ne.s32.totalorder %s152, %s153
      %p162 = scmp.eq.s32.totalorder %s24, 0
      %p163 = por %p161, %p162
      %p164 = scmp.ne.s32.totalorder %s152, %s153
      %p165 = scmp.eq.s32.totalorder %s25, 3
      %p166 = por %p164, %p165
      %p168 = scmp.ne.s32.totalorder %s153, %s167
      %p169 = scmp.eq.s32.totalorder %s25, 0
      %p170 = por %p168, %p169
      %s171 = ssub.s32 %s26, %s45
      %s172 = ssub.s32 %s27, %s41
      %s173 = sor.u32 %s171, %s172
      %s174 = ssub.s32 %s28, %s37
      %s175 = sor.u32 %s173, %s174
      %p176 = scmp.eq.s32.totalorder %s175, 0
      %s178 = sadd.s32 %s177, 1
      %s179 = scalar_select %p176, %s177, %s178
      %p182 = pneg %p176
      %p183 = scmp.eq.s32.totalorder %s19, 3
      %p184 = por %p182, %p183
      %p185 = scmp.ne.s32.totalorder %s177, %s180
      %p186 = scmp.eq.s32.totalorder %s19, 0
      %p187 = por %p185, %p186
      %p188 = scmp.ne.s32.totalorder %s177, %s180
      %p189 = scmp.eq.s32.totalorder %s24, 3
      %p190 = por %p188, %p189
      %p191 = scmp.ne.s32.totalorder %s180, %s181
      %p192 = scmp.eq.s32.totalorder %s24, 0
      %p193 = por %p191, %p192
      %p194 = scmp.ne.s32.totalorder %s180, %s181
      %p195 = scmp.eq.s32.totalorder %s25, 3
      %p196 = por %p194, %p195
      %p198 = scmp.ne.s32.totalorder %s181, %s197
      %p199 = scmp.eq.s32.totalorder %s25, 0
      %p200 = por %p198, %p199
      %p201 = scmp.le.s32.totalorder 1, %s19
      %p202 = scmp.lt.s32.totalorder %s19, 5
      %p203 = pnand %p201, %p202
      %p204 = pneg %p203
      // Predicated region
      $region9: #{tpu_custom_call.1} parent=5 // pred_check
        _
      $region10: #{tpu_custom_call.1} parent=5 // pred_check_branch
        %206 = sbr.rel (%p203) target = $region12
      $region11: #{tpu_custom_call.1} parent=5 // pred_region
        %s207 = ssub.s32 %s19, 1
        // Predicated region
        $region13: #{tpu_custom_call.1} parent=11 // pred_check
          %p208 = pneg %p64
        $region14: #{tpu_custom_call.1} parent=11 // pred_check_branch
          %210 = sbr.rel (%p208) target = $region16
        $region15: #{tpu_custom_call.1} parent=11 // pred_region
          %s212 = ssub.s32 256, 256
          %213 = vsyncadd [#allocation5], %s212
          %s214 = smul.addr %s29, 2
          %s215 = smul.addr %s214, 128
          %s216 = scalar_lea.hbm %s0, %s215
          %s217 = sshll.u32 [#allocation4], 4
          %s218 = int_to_ptr.vmem [resolvable:$true] %s217
          %223 = dma.hbm_to_vmem [thread:$0]  %s216, 256, %s218, [#allocation5], 128, 128, 8
        $region16: #{tpu_custom_call.1} parent=11 // pred_fallthru
          _
        // Predicated region
        $region17: #{tpu_custom_call.1} parent=11 // pred_check
          %p224 = pneg %p116
        $region18: #{tpu_custom_call.1} parent=11 // pred_check_branch
          %226 = sbr.rel (%p224) target = $region20
        $region19: #{tpu_custom_call.1} parent=11 // pred_region
          %s227 = smul.u32 2, %s31
          %s229 = ssub.s32 6144, 6144
          %230 = vsyncadd [#allocation8], %s229
          %s231 = smul.addr %s227, 128
          %s232 = scalar_lea.hbm %s2, %s231
          %s233 = sshll.u32 [#allocation9], 4
          %s234 = int_to_ptr.vmem [resolvable:$true] %s233
          %239 = dma.hbm_to_vmem [thread:$0]  %s232, 6144, %s234, [#allocation8], 256, 256, 16
        $region20: #{tpu_custom_call.1} parent=11 // pred_fallthru
          _
        // Predicated region
        $region21: #{tpu_custom_call.1} parent=11 // pred_check
          %p240 = pneg %p142
        $region22: #{tpu_custom_call.1} parent=11 // pred_check_branch
          %242 = sbr.rel (%p240) target = $region24
        $region23: #{tpu_custom_call.1} parent=11 // pred_region
          %s243 = smul.u32 2, %s31
          %p244 = scmp.lt.s32.totalorder %s243, 1
          %s245 = scalar_select %p244, %s243, 1
          %s246 = scalar_lea.vmem %s3, %s245
          %s247 = smul.u32 2, %s31
        $region24: #{tpu_custom_call.1} parent=11 // pred_fallthru
          _
        // Predicated region
        $region25: #{tpu_custom_call.1} parent=11 // pred_check
          %p248 = pneg %p163
        $region26: #{tpu_custom_call.1} parent=11 // pred_check_branch
          %250 = sbr.rel (%p248) target = $region28
        $region27: #{tpu_custom_call.1} parent=11 // pred_region
          _
        $region28: #{tpu_custom_call.1} parent=11 // pred_fallthru
          _
      $region12: #{tpu_custom_call.1} parent=5 // pred_fallthru
        _
      %p251 = scmp.lt.s32.totalorder %s19, 4
      // Predicated region
      $region29: #{tpu_custom_call.1} parent=5 // pred_check
        %p252 = pneg %p251
      $region30: #{tpu_custom_call.1} parent=5 // pred_check_branch
        %254 = sbr.rel (%p252) target = $region32
      $region31: #{tpu_custom_call.1} parent=5 // pred_region
        // Predicated region
        $region33: #{tpu_custom_call.1} parent=31 // pred_check
          %p255 = pneg %p84
        $region34: #{tpu_custom_call.1} parent=31 // pred_check_branch
          %257 = sbr.rel (%p255) target = $region36
        $region35: #{tpu_custom_call.1} parent=31 // pred_region
          %s258 = sand.u32 %s19, 1
          %s259 = scalar_lea.sflag [#allocation8], %s258
          %s260 = sand.u32 %s74, 1
          %s261 = smul.addr %s260, 48
          %s262 = scalar_lea.vmem [#allocation7], %s261
          %s264 = ssub.s32 768, 768
          %265 = vsyncadd %s259, %s264
          %s266 = smul.addr %s27, 6
          %s267 = smul.addr %s266, 128
          %s268 = scalar_lea.hbm %s1, %s267
          %s269 = sshll.u32 %s262, 4
          %s270 = int_to_ptr.vmem [resolvable:$true] %s269
          %275 = dma.hbm_to_vmem [thread:$0]  %s268, 768, %s270, %s259, 128, 128, 8
        $region36: #{tpu_custom_call.1} parent=31 // pred_fallthru
          _
      $region32: #{tpu_custom_call.1} parent=5 // pred_fallthru
        _
      %p276 = scmp.le.s32.totalorder 1, %s19
      %p277 = scmp.lt.s32.totalorder %s19, 5
      %p278 = pnand %p276, %p277
      %p279 = pneg %p278
      // Predicated region
      $region37: #{tpu_custom_call.1} parent=5 // pred_check
        _
      $region38: #{tpu_custom_call.1} parent=5 // pred_check_branch
        %281 = sbr.rel (%p278) target = $region40
      $region39: #{tpu_custom_call.1} parent=5 // pred_region
        %s282 = ssub.s32 %s19, 1
        // Predicated region
        $region41: #{tpu_custom_call.1} parent=39 // pred_check
          %p283 = pneg %p64
        $region42: #{tpu_custom_call.1} parent=39 // pred_check_branch
          %285 = sbr.rel (%p283) target = $region44
        $region43: #{tpu_custom_call.1} parent=39 // pred_region
          %286 = dma.done [#allocation5], 256
        $region44: #{tpu_custom_call.1} parent=39 // pred_fallthru
          _
        %s287 = sand.u32 %s24, 1
        %s288 = scalar_lea.sflag [#allocation8], %s287
        %s289 = sand.u32 %s77, 1
        %s290 = smul.addr %s289, 48
        %s291 = scalar_lea.vmem [#allocation7], %s290
        // Predicated region
        $region45: #{tpu_custom_call.1} parent=39 // pred_check
          %p292 = pneg %p90
        $region46: #{tpu_custom_call.1} parent=39 // pred_check_branch
          %294 = sbr.rel (%p292) target = $region48
        $region47: #{tpu_custom_call.1} parent=39 // pred_region
          %295 = dma.done %s288, 768
        $region48: #{tpu_custom_call.1} parent=39 // pred_fallthru
          _
        // Predicated region
        $region49: #{tpu_custom_call.1} parent=39 // pred_check
          %p296 = pneg %p116
        $region50: #{tpu_custom_call.1} parent=39 // pred_check_branch
          %298 = sbr.rel (%p296) target = $region52
        $region51: #{tpu_custom_call.1} parent=39 // pred_region
          %299 = dma.done [#allocation8], 6144
        $region52: #{tpu_custom_call.1} parent=39 // pred_fallthru
          _
        %p300 = pneg %p64
        %p301 = pneg %p61
        %s302 = sand.u32 %s24, 1
        %s303 = scalar_lea.sflag [#allocation8], %s302
        %s304 = sand.u32 %s77, 1
        %s305 = smul.addr %s304, 48
        %s306 = scalar_lea.vmem [#allocation7], %s305
        %p307 = pneg %p90
        %p308 = pneg %p87
        %p309 = pneg %p116
        %p310 = pneg %p113
        %s311 = smul.u32 2, %s31
        %p312 = scmp.lt.s32.totalorder %s311, 1
        %s313 = scalar_select %p312, %s311, 1
        %s314 = scalar_lea.vmem %s3, %s313
        %p315 = pneg %p142
        %p316 = pneg %p139
        %p317 = pneg %p163
        %p318 = pneg %p160
        %p319 = pneg %p193
        %p320 = pneg %p190
        %s321 = sand.u32 %s180, 1
        %s322 = scalar_lea.sflag [#allocation6], %s321
        %s323 = sand.u32 %s180, 1
        %s324 = smul.addr %s323, 32
        %s325 = scalar_lea.vmem [#allocation10], %s324
        %s326 = smul.u32 2, %s31
        %s327 = smul.u32 2, %s31
        %p328 = scmp.lt.s32.totalorder %s327, 1
        %s329 = scalar_select %p328, %s327, 1
        %s330 = scalar_lea.vmem %s3, %s329
        %s331 = smul.u32 2, %s31
        %s332 = smul.u32 2, %s30
        %s333 = smul.u32 2, %s31
        %p334 = scmp.eq.s32.totalorder %s31, 0
        // Predicated region
        $region53: #{tpu_custom_call.1} parent=39 // pred_check
          %p335 = pneg %p334
        $region54: #{tpu_custom_call.1} parent=39 // pred_check_branch
          %337 = sbr.rel (%p335) target = $region56
        $region55: #{tpu_custom_call.1} parent=39 // pred_region
          %v338 = vld [vmem:[#allocation4] sm:$0xff]
          %v339 = vld [vmem:[#allocation4 + $0x8] sm:$0xff]
          %v340 = vld [vmem:[%s291] sm:$0xff]
          %v341 = vld [vmem:[%s291 + $0x8] sm:$0xff]
          %vm342 = vcmask 130048
          %v344 = vsel %vm342, %v340, 0
          %v347 = vsel %vm342, %v341, 0
          %349 = vmatprep.subr.mxu0 0.0
          %350 = vmatpush1.msra.mxu0 0.0
          %351 = vmatprep.subr.mxu0 0.0
          %352 = vmatpush1.msra.mxu0 0.0
          %353 = vmatprep.subr.mxu0 0.0
          %354 = vmatpush1.msra.mxu0 0.0
          %355 = vmatprep.subr.mxu0 0.0
          %356 = vmatpush1.msra.mxu0 0.0
          %357 = vmatprep.subr.mxu0 0.0
          %358 = vmatpush1.msra.mxu0 0.0
          %359 = vmatprep.subr.mxu0 0.0
          %360 = vmatpush1.msra.mxu0 0.0
          %361 = vmatprep.subr.mxu0 0.0
          %362 = vmatpush1.msra.mxu0 0.0
          %363 = vmatprep.subr.mxu0 0.0
          %364 = vmatpush1.msra.mxu0 0.0
          %365 = vmatprep.subr.mxu0 0.0
          %366 = vmatpush1.msra.mxu0 0.0
          %367 = vmatprep.subr.mxu0 0.0
          %368 = vmatpush1.msra.mxu0 0.0
          %369 = vmatprep.subr.mxu0 0.0
          %370 = vmatpush1.msra.mxu0 0.0
          %371 = vmatprep.subr.mxu0 0.0
          %372 = vmatpush1.msra.mxu0 0.0
          %373 = vmatprep.subr.mxu0 0.0
          %374 = vmatpush1.msra.mxu0 0.0
          %375 = vmatprep.subr.mxu0 0.0
          %376 = vmatpush1.msra.mxu0 0.0
          %377 = vmatprep.subr.mxu0 0.0
          %378 = vmatpush1.msra.mxu0 %v339
          %379 = vmatprep.subr.mxu0 0.0
          %380 = vmatpush1.msra.mxu0 %v338
          %381 = vmatprep.subr.mxu0 0.0
          %382 = vmatpush2.msra.mxu0 0.0
          %383 = vmatprep.subr.mxu0 0.0
          %384 = vmatpush2.msra.mxu0 0.0
          %385 = vmatprep.subr.mxu0 0.0
          %386 = vmatpush2.msra.mxu0 0.0
          %387 = vmatprep.subr.mxu0 0.0
          %388 = vmatpush2.msra.mxu0 0.0
          %389 = vmatprep.subr.mxu0 0.0
          %390 = vmatpush2.msra.mxu0 0.0
          %391 = vmatprep.subr.mxu0 0.0
          %392 = vmatpush2.msra.mxu0 0.0
          %393 = vmatprep.subr.mxu0 0.0
          %394 = vmatpush2.msra.mxu0 0.0
          %395 = vmatprep.subr.mxu0 0.0
          %396 = vmatpush2.msra.mxu0 0.0
          %397 = vmatprep.subr.mxu0 0.0
          %398 = vmatpush2.msra.mxu0 0.0
          %399 = vmatprep.subr.mxu0 0.0
          %400 = vmatpush2.msra.mxu0 0.0
          %401 = vmatprep.subr.mxu0 0.0
          %402 = vmatpush2.msra.mxu0 0.0
          %403 = vmatprep.subr.mxu0 0.0
          %404 = vmatpush2.msra.mxu0 0.0
          %405 = vmatprep.subr.mxu0 0.0
          %406 = vmatpush2.msra.mxu0 0.0
          %407 = vmatprep.subr.mxu0 0.0
          %408 = vmatpush2.msra.mxu0 0.0
          %409 = vmatprep.subr.mxu0 0.0
          %410 = vmatpush2.msra.mxu0 0.0
          %411 = vmatprep.subr.mxu0 0.0
          %412 = vmatpush2.msra.mxu0 0.0
          %413 = vmatprep.mubr.f32.mxu0 0.0
          %414 = vmatmul.mubr.f32.gmra.mxu0 %v344
          %v415 = vpop.f32.mrf.mxu0
          %v416 = vadd.f32 0.0, %v415
          %v417 = vpop.f32.mrf.mxu0
          %418 = vmatprep.mubr.f32.mxu0 0.0
          %419 = vmatmul.mubr.f32.gmra.mxu0 %v347
          %v420 = vpop.f32.mrf.mxu0
          %v421 = vadd.f32 0.0, %v420
          %v422 = vpop.f32.mrf.mxu0
          %423 = vdwg.mxu0
          %vm424 = vcmask 523264
          %425 = vst.msk [vmem:[#allocation2] sm:$0xff] %vm424, %v416
          %426 = vst.msk [vmem:[#allocation2 + $0x8] sm:$0xff] %vm424, %v421
          %s427 = scalar_lea.vmem %s291, 16 [#allocation7]
          %v428 = vld [vmem:[%s427] sm:$0xff]
          %v429 = vld [vmem:[%s427 + $0x8] sm:$0xff]
          %v431 = vsel %vm342, %v428, 0
          %v434 = vsel %vm342, %v429, 0
          %436 = vmatprep.subr.mxu0 0.0
          %437 = vmatpush1.msra.mxu0 0.0
          %438 = vmatprep.subr.mxu0 0.0
          %439 = vmatpush1.msra.mxu0 0.0
          %440 = vmatprep.subr.mxu0 0.0
          %441 = vmatpush1.msra.mxu0 0.0
          %442 = vmatprep.subr.mxu0 0.0
          %443 = vmatpush1.msra.mxu0 0.0
          %444 = vmatprep.subr.mxu0 0.0
          %445 = vmatpush1.msra.mxu0 0.0
          %446 = vmatprep.subr.mxu0 0.0
          %447 = vmatpush1.msra.mxu0 0.0
          %448 = vmatprep.subr.mxu0 0.0
          %449 = vmatpush1.msra.mxu0 0.0
          %450 = vmatprep.subr.mxu0 0.0
          %451 = vmatpush1.msra.mxu0 0.0
          %452 = vmatprep.subr.mxu0 0.0
          %453 = vmatpush1.msra.mxu0 0.0
          %454 = vmatprep.subr.mxu0 0.0
          %455 = vmatpush1.msra.mxu0 0.0
          %456 = vmatprep.subr.mxu0 0.0
          %457 = vmatpush1.msra.mxu0 0.0
          %458 = vmatprep.subr.mxu0 0.0
          %459 = vmatpush1.msra.mxu0 0.0
          %460 = vmatprep.subr.mxu0 0.0
          %461 = vmatpush1.msra.mxu0 0.0
          %462 = vmatprep.subr.mxu0 0.0
          %463 = vmatpush1.msra.mxu0 0.0
          %464 = vmatprep.subr.mxu0 0.0
          %465 = vmatpush1.msra.mxu0 %v339
          %466 = vmatprep.subr.mxu0 0.0
          %467 = vmatpush1.msra.mxu0 %v338
          %468 = vmatprep.subr.mxu0 0.0
          %469 = vmatpush2.msra.mxu0 0.0
          %470 = vmatprep.subr.mxu0 0.0
          %471 = vmatpush2.msra.mxu0 0.0
          %472 = vmatprep.subr.mxu0 0.0
          %473 = vmatpush2.msra.mxu0 0.0
          %474 = vmatprep.subr.mxu0 0.0
          %475 = vmatpush2.msra.mxu0 0.0
          %476 = vmatprep.subr.mxu0 0.0
          %477 = vmatpush2.msra.mxu0 0.0
          %478 = vmatprep.subr.mxu0 0.0
          %479 = vmatpush2.msra.mxu0 0.0
          %480 = vmatprep.subr.mxu0 0.0
          %481 = vmatpush2.msra.mxu0 0.0
          %482 = vmatprep.subr.mxu0 0.0
          %483 = vmatpush2.msra.mxu0 0.0
          %484 = vmatprep.subr.mxu0 0.0
          %485 = vmatpush2.msra.mxu0 0.0
          %486 = vmatprep.subr.mxu0 0.0
          %487 = vmatpush2.msra.mxu0 0.0
          %488 = vmatprep.subr.mxu0 0.0
          %489 = vmatpush2.msra.mxu0 0.0
          %490 = vmatprep.subr.mxu0 0.0
          %491 = vmatpush2.msra.mxu0 0.0
          %492 = vmatprep.subr.mxu0 0.0
          %493 = vmatpush2.msra.mxu0 0.0
          %494 = vmatprep.subr.mxu0 0.0
          %495 = vmatpush2.msra.mxu0 0.0
          %496 = vmatprep.subr.mxu0 0.0
          %497 = vmatpush2.msra.mxu0 0.0
          %498 = vmatprep.subr.mxu0 0.0
          %499 = vmatpush2.msra.mxu0 0.0
          %500 = vmatprep.mubr.f32.mxu0 0.0
          %501 = vmatmul.mubr.f32.gmra.mxu0 %v431
          %v502 = vpop.f32.mrf.mxu0
          %v503 = vadd.f32 0.0, %v502
          %v504 = vpop.f32.mrf.mxu0
          %505 = vmatprep.mubr.f32.mxu0 0.0
          %506 = vmatmul.mubr.f32.gmra.mxu0 %v434
          %v507 = vpop.f32.mrf.mxu0
          %v508 = vadd.f32 0.0, %v507
          %v509 = vpop.f32.mrf.mxu0
          %510 = vdwg.mxu0
          %s511 = scalar_lea.vmem [#allocation2], 16
          %512 = vst.msk [vmem:[%s511] sm:$0xff] %vm424, %v503
          %513 = vst.msk [vmem:[%s511 + $0x8] sm:$0xff] %vm424, %v508
          %s514 = scalar_lea.vmem %s291, 32 [#allocation7]
          %v515 = vld [vmem:[%s514] sm:$0xff]
          %v516 = vld [vmem:[%s514 + $0x8] sm:$0xff]
          %v518 = vsel %vm342, %v515, 0
          %v521 = vsel %vm342, %v516, 0
          %523 = vmatprep.subr.mxu0 0.0
          %524 = vmatpush1.msra.mxu0 0.0
          %525 = vmatprep.subr.mxu0 0.0
          %526 = vmatpush1.msra.mxu0 0.0
          %527 = vmatprep.subr.mxu0 0.0
          %528 = vmatpush1.msra.mxu0 0.0
          %529 = vmatprep.subr.mxu0 0.0
          %530 = vmatpush1.msra.mxu0 0.0
          %531 = vmatprep.subr.mxu0 0.0
          %532 = vmatpush1.msra.mxu0 0.0
          %533 = vmatprep.subr.mxu0 0.0
          %534 = vmatpush1.msra.mxu0 0.0
          %535 = vmatprep.subr.mxu0 0.0
          %536 = vmatpush1.msra.mxu0 0.0
          %537 = vmatprep.subr.mxu0 0.0
          %538 = vmatpush1.msra.mxu0 0.0
          %539 = vmatprep.subr.mxu0 0.0
          %540 = vmatpush1.msra.mxu0 0.0
          %541 = vmatprep.subr.mxu0 0.0
          %542 = vmatpush1.msra.mxu0 0.0
          %543 = vmatprep.subr.mxu0 0.0
          %544 = vmatpush1.msra.mxu0 0.0
          %545 = vmatprep.subr.mxu0 0.0
          %546 = vmatpush1.msra.mxu0 0.0
          %547 = vmatprep.subr.mxu0 0.0
          %548 = vmatpush1.msra.mxu0 0.0
          %549 = vmatprep.subr.mxu0 0.0
          %550 = vmatpush1.msra.mxu0 0.0
          %551 = vmatprep.subr.mxu0 0.0
          %552 = vmatpush1.msra.mxu0 %v339
          %553 = vmatprep.subr.mxu0 0.0
          %554 = vmatpush1.msra.mxu0 %v338
          %555 = vmatprep.subr.mxu0 0.0
          %556 = vmatpush2.msra.mxu0 0.0
          %557 = vmatprep.subr.mxu0 0.0
          %558 = vmatpush2.msra.mxu0 0.0
          %559 = vmatprep.subr.mxu0 0.0
          %560 = vmatpush2.msra.mxu0 0.0
          %561 = vmatprep.subr.mxu0 0.0
          %562 = vmatpush2.msra.mxu0 0.0
          %563 = vmatprep.subr.mxu0 0.0
          %564 = vmatpush2.msra.mxu0 0.0
          %565 = vmatprep.subr.mxu0 0.0
          %566 = vmatpush2.msra.mxu0 0.0
          %567 = vmatprep.subr.mxu0 0.0
          %568 = vmatpush2.msra.mxu0 0.0
          %569 = vmatprep.subr.mxu0 0.0
          %570 = vmatpush2.msra.mxu0 0.0
          %571 = vmatprep.subr.mxu0 0.0
          %572 = vmatpush2.msra.mxu0 0.0
          %573 = vmatprep.subr.mxu0 0.0
          %574 = vmatpush2.msra.mxu0 0.0
          %575 = vmatprep.subr.mxu0 0.0
          %576 = vmatpush2.msra.mxu0 0.0
          %577 = vmatprep.subr.mxu0 0.0
          %578 = vmatpush2.msra.mxu0 0.0
          %579 = vmatprep.subr.mxu0 0.0
          %580 = vmatpush2.msra.mxu0 0.0
          %581 = vmatprep.subr.mxu0 0.0
          %582 = vmatpush2.msra.mxu0 0.0
          %583 = vmatprep.subr.mxu0 0.0
          %584 = vmatpush2.msra.mxu0 0.0
          %585 = vmatprep.subr.mxu0 0.0
          %586 = vmatpush2.msra.mxu0 0.0
          %587 = vmatprep.mubr.f32.mxu0 0.0
          %588 = vmatmul.mubr.f32.gmra.mxu0 %v518
          %v589 = vpop.f32.mrf.mxu0
          %v590 = vadd.f32 0.0, %v589
          %v591 = vpop.f32.mrf.mxu0
          %592 = vmatprep.mubr.f32.mxu0 0.0
          %593 = vmatmul.mubr.f32.gmra.mxu0 %v521
          %v594 = vpop.f32.mrf.mxu0
          %v595 = vadd.f32 0.0, %v594
          %v596 = vpop.f32.mrf.mxu0
          %597 = vdwg.mxu0
          %s598 = scalar_lea.vmem [#allocation2], 32
          %599 = vst.msk [vmem:[%s598] sm:$0xff] %vm424, %v590
          %600 = vst.msk [vmem:[%s598 + $0x8] sm:$0xff] %vm424, %v595
        $region56: #{tpu_custom_call.1} parent=39 // pred_fallthru
          _
        %v601 = vld [vmem:[#allocation2] sm:$0xff]
        %v602 = vld [vmem:[#allocation2 + $0x8] sm:$0xff]
        %v603 = vld [vmem:[#allocation9] sm:$0xff]
        %v604 = vld [vmem:[#allocation9 + $0x8] sm:$0xff]
        %v605 = vld [vmem:[#allocation9 + $0x10] sm:$0xff]
        %v606 = vld [vmem:[#allocation9 + $0x18] sm:$0xff]
        %v607 = vld [vmem:[#allocation9 + $0x20] sm:$0xff]
        %v608 = vld [vmem:[#allocation9 + $0x28] sm:$0xff]
        %v609 = vld [vmem:[#allocation9 + $0x30] sm:$0xff]
        %v610 = vld [vmem:[#allocation9 + $0x38] sm:$0xff]
        %v611 = vld [vmem:[#allocation9 + $0x40] sm:$0xff]
        %v612 = vld [vmem:[#allocation9 + $0x48] sm:$0xff]
        %v613 = vld [vmem:[#allocation9 + $0x50] sm:$0xff]
        %v614 = vld [vmem:[#allocation9 + $0x58] sm:$0xff]
        %v615 = vld [vmem:[#allocation9 + $0x60] sm:$0xff]
        %v616 = vld [vmem:[#allocation9 + $0x68] sm:$0xff]
        %v617 = vld [vmem:[#allocation9 + $0x70] sm:$0xff]
        %v618 = vld [vmem:[#allocation9 + $0x78] sm:$0xff]
        %s619 = scalar_lea.vmem [#allocation2], 16
        %v620 = vld [vmem:[%s619] sm:$0xff]
        %v621 = vld [vmem:[%s619 + $0x8] sm:$0xff]
        %s622 = scalar_lea.vmem [#allocation9], 128
        %v623 = vld [vmem:[%s622] sm:$0xff]
        %v624 = vld [vmem:[%s622 + $0x8] sm:$0xff]
        %v625 = vld [vmem:[%s622 + $0x10] sm:$0xff]
        %v626 = vld [vmem:[%s622 + $0x18] sm:$0xff]
        %v627 = vld [vmem:[%s622 + $0x20] sm:$0xff]
        %v628 = vld [vmem:[%s622 + $0x28] sm:$0xff]
        %v629 = vld [vmem:[%s622 + $0x30] sm:$0xff]
        %v630 = vld [vmem:[%s622 + $0x38] sm:$0xff]
        %v631 = vld [vmem:[%s622 + $0x40] sm:$0xff]
        %v632 = vld [vmem:[%s622 + $0x48] sm:$0xff]
        %v633 = vld [vmem:[%s622 + $0x50] sm:$0xff]
        %v634 = vld [vmem:[%s622 + $0x58] sm:$0xff]
        %v635 = vld [vmem:[%s622 + $0x60] sm:$0xff]
        %v636 = vld [vmem:[%s622 + $0x68] sm:$0xff]
        %v637 = vld [vmem:[%s622 + $0x70] sm:$0xff]
        %v638 = vld [vmem:[%s622 + $0x78] sm:$0xff]
        %vm639 = vcmask 523264
        %v641 = vsel %vm639, %v620, 0
        %v644 = vsel %vm639, %v621, 0
        %646 = vmatprep.subr.mxu0 0.0
        %647 = vmatpush1.msra.mxu0 0.0
        %648 = vmatprep.subr.mxu0 0.0
        %649 = vmatpush1.msra.mxu0 0.0
        %650 = vmatprep.subr.mxu0 0.0
        %651 = vmatpush1.msra.mxu0 0.0
        %652 = vmatprep.subr.mxu0 0.0
        %653 = vmatpush1.msra.mxu0 0.0
        %654 = vmatprep.subr.mxu0 0.0
        %655 = vmatpush1.msra.mxu0 0.0
        %656 = vmatprep.subr.mxu0 0.0
        %657 = vmatpush1.msra.mxu0 0.0
        %658 = vmatprep.subr.mxu0 0.0
        %659 = vmatpush1.msra.mxu0 0.0
        %660 = vmatprep.subr.mxu0 0.0
        %661 = vmatpush1.msra.mxu0 0.0
        %662 = vmatprep.subr.mxu0 %v638
        %663 = vmatpush1.msra.mxu0 %v637
        %664 = vmatprep.subr.mxu0 %v636
        %665 = vmatpush1.msra.mxu0 %v635
        %666 = vmatprep.subr.mxu0 %v634
        %667 = vmatpush1.msra.mxu0 %v633
        %668 = vmatprep.subr.mxu0 %v632
        %669 = vmatpush1.msra.mxu0 %v631
        %670 = vmatprep.subr.mxu0 %v630
        %671 = vmatpush1.msra.mxu0 %v629
        %672 = vmatprep.subr.mxu0 %v628
        %673 = vmatpush1.msra.mxu0 %v627
        %674 = vmatprep.subr.mxu0 %v626
        %675 = vmatpush1.msra.mxu0 %v625
        %676 = vmatprep.subr.mxu0 %v624
        %677 = vmatpush1.msra.mxu0 %v623
        %678 = vmatprep.subr.mxu0 0.0
        %679 = vmatpush2.msra.mxu0 0.0
        %680 = vmatprep.subr.mxu0 0.0
        %681 = vmatpush2.msra.mxu0 0.0
        %682 = vmatprep.subr.mxu0 0.0
        %683 = vmatpush2.msra.mxu0 0.0
        %684 = vmatprep.subr.mxu0 0.0
        %685 = vmatpush2.msra.mxu0 0.0
        %686 = vmatprep.subr.mxu0 0.0
        %687 = vmatpush2.msra.mxu0 0.0
        %688 = vmatprep.subr.mxu0 0.0
        %689 = vmatpush2.msra.mxu0 0.0
        %690 = vmatprep.subr.mxu0 0.0
        %691 = vmatpush2.msra.mxu0 0.0
        %692 = vmatprep.subr.mxu0 0.0
        %693 = vmatpush2.msra.mxu0 0.0
        %694 = vmatprep.subr.mxu0 0.0
        %695 = vmatpush2.msra.mxu0 0.0
        %696 = vmatprep.subr.mxu0 0.0
        %697 = vmatpush2.msra.mxu0 0.0
        %698 = vmatprep.subr.mxu0 0.0
        %699 = vmatpush2.msra.mxu0 0.0
        %700 = vmatprep.subr.mxu0 0.0
        %701 = vmatpush2.msra.mxu0 0.0
        %702 = vmatprep.subr.mxu0 0.0
        %703 = vmatpush2.msra.mxu0 0.0
        %704 = vmatprep.subr.mxu0 0.0
        %705 = vmatpush2.msra.mxu0 0.0
        %706 = vmatprep.subr.mxu0 0.0
        %707 = vmatpush2.msra.mxu0 0.0
        %708 = vmatprep.subr.mxu0 0.0
        %709 = vmatpush2.msra.mxu0 0.0
        %710 = vmatprep.mubr.f32.mxu0 0.0
        %711 = vmatmul.mubr.f32.gmra.mxu0 %v641
        %v712 = vpop.f32.mrf.mxu0
        %v713 = vadd.f32 0.0, %v712
        %v714 = vpop.f32.mrf.mxu0
        %v715 = vadd.f32 0.0, %v714
        %716 = vmatprep.mubr.f32.mxu0 0.0
        %717 = vmatmul.mubr.f32.gmra.mxu0 %v644
        %v718 = vpop.f32.mrf.mxu0
        %v719 = vadd.f32 0.0, %v718
        %v720 = vpop.f32.mrf.mxu0
        %v721 = vadd.f32 0.0, %v720
        %722 = vdwg.mxu0
        %v724 = vsel %vm639, %v601, 0
        %v727 = vsel %vm639, %v602, 0
        %729 = vmatprep.subr.mxu0 0.0
        %730 = vmatpush1.msra.mxu0 0.0
        %731 = vmatprep.subr.mxu0 0.0
        %732 = vmatpush1.msra.mxu0 0.0
        %733 = vmatprep.subr.mxu0 0.0
        %734 = vmatpush1.msra.mxu0 0.0
        %735 = vmatprep.subr.mxu0 0.0
        %736 = vmatpush1.msra.mxu0 0.0
        %737 = vmatprep.subr.mxu0 0.0
        %738 = vmatpush1.msra.mxu0 0.0
        %739 = vmatprep.subr.mxu0 0.0
        %740 = vmatpush1.msra.mxu0 0.0
        %741 = vmatprep.subr.mxu0 0.0
        %742 = vmatpush1.msra.mxu0 0.0
        %743 = vmatprep.subr.mxu0 0.0
        %744 = vmatpush1.msra.mxu0 0.0
        %745 = vmatprep.subr.mxu0 %v618
        %746 = vmatpush1.msra.mxu0 %v617
        %747 = vmatprep.subr.mxu0 %v616
        %748 = vmatpush1.msra.mxu0 %v615
        %749 = vmatprep.subr.mxu0 %v614
        %750 = vmatpush1.msra.mxu0 %v613
        %751 = vmatprep.subr.mxu0 %v612
        %752 = vmatpush1.msra.mxu0 %v611
        %753 = vmatprep.subr.mxu0 %v610
        %754 = vmatpush1.msra.mxu0 %v609
        %755 = vmatprep.subr.mxu0 %v608
        %756 = vmatpush1.msra.mxu0 %v607
        %757 = vmatprep.subr.mxu0 %v606
        %758 = vmatpush1.msra.mxu0 %v605
        %759 = vmatprep.subr.mxu0 %v604
        %760 = vmatpush1.msra.mxu0 %v603
        %761 = vmatprep.subr.mxu0 0.0
        %762 = vmatpush2.msra.mxu0 0.0
        %763 = vmatprep.subr.mxu0 0.0
        %764 = vmatpush2.msra.mxu0 0.0
        %765 = vmatprep.subr.mxu0 0.0
        %766 = vmatpush2.msra.mxu0 0.0
        %767 = vmatprep.subr.mxu0 0.0
        %768 = vmatpush2.msra.mxu0 0.0
        %769 = vmatprep.subr.mxu0 0.0
        %770 = vmatpush2.msra.mxu0 0.0
        %771 = vmatprep.subr.mxu0 0.0
        %772 = vmatpush2.msra.mxu0 0.0
        %773 = vmatprep.subr.mxu0 0.0
        %774 = vmatpush2.msra.mxu0 0.0
        %775 = vmatprep.subr.mxu0 0.0
        %776 = vmatpush2.msra.mxu0 0.0
        %777 = vmatprep.subr.mxu0 0.0
        %778 = vmatpush2.msra.mxu0 0.0
        %779 = vmatprep.subr.mxu0 0.0
        %780 = vmatpush2.msra.mxu0 0.0
        %781 = vmatprep.subr.mxu0 0.0
        %782 = vmatpush2.msra.mxu0 0.0
        %783 = vmatprep.subr.mxu0 0.0
        %784 = vmatpush2.msra.mxu0 0.0
        %785 = vmatprep.subr.mxu0 0.0
        %786 = vmatpush2.msra.mxu0 0.0
        %787 = vmatprep.subr.mxu0 0.0
        %788 = vmatpush2.msra.mxu0 0.0
        %789 = vmatprep.subr.mxu0 0.0
        %790 = vmatpush2.msra.mxu0 0.0
        %791 = vmatprep.subr.mxu0 0.0
        %792 = vmatpush2.msra.mxu0 0.0
        %793 = vmatprep.mubr.f32.mxu0 0.0
        %794 = vmatmul.mubr.f32.gmra.mxu0 %v724
        %v795 = vpop.f32.mrf.mxu0
        %v796 = vadd.f32 %v713, %v795
        %v797 = vpop.f32.mrf.mxu0
        %v798 = vadd.f32 %v715, %v797
        %799 = vmatprep.mubr.f32.mxu0 0.0
        %800 = vmatmul.mubr.f32.gmra.mxu0 %v727
        %v801 = vpop.f32.mrf.mxu0
        %v802 = vadd.f32 %v719, %v801
        %v803 = vpop.f32.mrf.mxu0
        %v804 = vadd.f32 %v721, %v803
        %805 = vdwg.mxu0
        %s806 = scalar_lea.vmem [#allocation2], 32
        %v807 = vld [vmem:[%s806] sm:$0xff]
        %v808 = vld [vmem:[%s806 + $0x8] sm:$0xff]
        %s809 = scalar_lea.vmem [#allocation9], 256
        %v810 = vld [vmem:[%s809] sm:$0xff]
        %v811 = vld [vmem:[%s809 + $0x8] sm:$0xff]
        %v812 = vld [vmem:[%s809 + $0x10] sm:$0xff]
        %v813 = vld [vmem:[%s809 + $0x18] sm:$0xff]
        %v814 = vld [vmem:[%s809 + $0x20] sm:$0xff]
        %v815 = vld [vmem:[%s809 + $0x28] sm:$0xff]
        %v816 = vld [vmem:[%s809 + $0x30] sm:$0xff]
        %v817 = vld [vmem:[%s809 + $0x38] sm:$0xff]
        %v818 = vld [vmem:[%s809 + $0x40] sm:$0xff]
        %v819 = vld [vmem:[%s809 + $0x48] sm:$0xff]
        %v820 = vld [vmem:[%s809 + $0x50] sm:$0xff]
        %v821 = vld [vmem:[%s809 + $0x58] sm:$0xff]
        %v822 = vld [vmem:[%s809 + $0x60] sm:$0xff]
        %v823 = vld [vmem:[%s809 + $0x68] sm:$0xff]
        %v824 = vld [vmem:[%s809 + $0x70] sm:$0xff]
        %v825 = vld [vmem:[%s809 + $0x78] sm:$0xff]
        %v827 = vsel %vm639, %v807, 0
        %v830 = vsel %vm639, %v808, 0
        %832 = vmatprep.subr.mxu0 0.0
        %833 = vmatpush1.msra.mxu0 0.0
        %834 = vmatprep.subr.mxu0 0.0
        %835 = vmatpush1.msra.mxu0 0.0
        %836 = vmatprep.subr.mxu0 0.0
        %837 = vmatpush1.msra.mxu0 0.0
        %838 = vmatprep.subr.mxu0 0.0
        %839 = vmatpush1.msra.mxu0 0.0
        %840 = vmatprep.subr.mxu0 0.0
        %841 = vmatpush1.msra.mxu0 0.0
        %842 = vmatprep.subr.mxu0 0.0
        %843 = vmatpush1.msra.mxu0 0.0
        %844 = vmatprep.subr.mxu0 0.0
        %845 = vmatpush1.msra.mxu0 0.0
        %846 = vmatprep.subr.mxu0 0.0
        %847 = vmatpush1.msra.mxu0 0.0
        %848 = vmatprep.subr.mxu0 %v825
        %849 = vmatpush1.msra.mxu0 %v824
        %850 = vmatprep.subr.mxu0 %v823
        %851 = vmatpush1.msra.mxu0 %v822
        %852 = vmatprep.subr.mxu0 %v821
        %853 = vmatpush1.msra.mxu0 %v820
        %854 = vmatprep.subr.mxu0 %v819
        %855 = vmatpush1.msra.mxu0 %v818
        %856 = vmatprep.subr.mxu0 %v817
        %857 = vmatpush1.msra.mxu0 %v816
        %858 = vmatprep.subr.mxu0 %v815
        %859 = vmatpush1.msra.mxu0 %v814
        %860 = vmatprep.subr.mxu0 %v813
        %861 = vmatpush1.msra.mxu0 %v812
        %862 = vmatprep.subr.mxu0 %v811
        %863 = vmatpush1.msra.mxu0 %v810
        %864 = vmatprep.subr.mxu0 0.0
        %865 = vmatpush2.msra.mxu0 0.0
        %866 = vmatprep.subr.mxu0 0.0
        %867 = vmatpush2.msra.mxu0 0.0
        %868 = vmatprep.subr.mxu0 0.0
        %869 = vmatpush2.msra.mxu0 0.0
        %870 = vmatprep.subr.mxu0 0.0
        %871 = vmatpush2.msra.mxu0 0.0
        %872 = vmatprep.subr.mxu0 0.0
        %873 = vmatpush2.msra.mxu0 0.0
        %874 = vmatprep.subr.mxu0 0.0
        %875 = vmatpush2.msra.mxu0 0.0
        %876 = vmatprep.subr.mxu0 0.0
        %877 = vmatpush2.msra.mxu0 0.0
        %878 = vmatprep.subr.mxu0 0.0
        %879 = vmatpush2.msra.mxu0 0.0
        %880 = vmatprep.subr.mxu0 0.0
        %881 = vmatpush2.msra.mxu0 0.0
        %882 = vmatprep.subr.mxu0 0.0
        %883 = vmatpush2.msra.mxu0 0.0
        %884 = vmatprep.subr.mxu0 0.0
        %885 = vmatpush2.msra.mxu0 0.0
        %886 = vmatprep.subr.mxu0 0.0
        %887 = vmatpush2.msra.mxu0 0.0
        %888 = vmatprep.subr.mxu0 0.0
        %889 = vmatpush2.msra.mxu0 0.0
        %890 = vmatprep.subr.mxu0 0.0
        %891 = vmatpush2.msra.mxu0 0.0
        %892 = vmatprep.subr.mxu0 0.0
        %893 = vmatpush2.msra.mxu0 0.0
        %894 = vmatprep.subr.mxu0 0.0
        %895 = vmatpush2.msra.mxu0 0.0
        %896 = vmatprep.mubr.f32.mxu0 0.0
        %897 = vmatmul.mubr.f32.gmra.mxu0 %v827
        %v898 = vpop.f32.mrf.mxu0
        %v899 = vadd.f32 0.0, %v898
        %v900 = vpop.f32.mrf.mxu0
        %v901 = vadd.f32 0.0, %v900
        %902 = vmatprep.mubr.f32.mxu0 0.0
        %903 = vmatmul.mubr.f32.gmra.mxu0 %v830
        %v904 = vpop.f32.mrf.mxu0
        %v905 = vadd.f32 0.0, %v904
        %v906 = vpop.f32.mrf.mxu0
        %v907 = vadd.f32 0.0, %v906
        %908 = vdwg.mxu0
        %v909 = vadd.f32 %v796, %v899
        %v910 = vadd.f32 %v798, %v901
        %v911 = vadd.f32 %v802, %v905
        %v912 = vadd.f32 %v804, %v907
        %v913 = vld [vmem:[%s330] sm:$0x3]
        %v915 = vlaneseq
        %v916 = vshrl.u32 %v915, 7
        %v917 = vsub.s32 0, %v916
        %v918 = vrot.slane %v913, %v917
        %v919 = vlaneseq
        %v920 = vshrl.u32 %v919, 7
        %v921 = vsub.s32 1, %v920
        %v922 = vrot.slane %v913, %v921
        %v925 = vadd.f32 %v909, %v918
        %v926 = vadd.f32 %v910, %v922
        %v927 = vadd.f32 %v911, %v918
        %v928 = vadd.f32 %v912, %v922
        %s929 = sld [smem:[#allocation3]]
        %vm930 = vcmp.gt.f32.partialorder %v925, 0.0
        %vm931 = vcmp.gt.f32.partialorder %v926, 0.0
        %vm932 = vcmp.gt.f32.partialorder %v927, 0.0
        %vm933 = vcmp.gt.f32.partialorder %v928, 0.0
        %v934 = vstv %s929
        %v935 = vmul.f32 %v934, %v925
        %v936 = vmul.f32 %v934, %v926
        %v937 = vmul.f32 %v934, %v927
        %v938 = vmul.f32 %v934, %v928
        %v939 = vsel %vm930, %v925, %v935
        %v940 = vsel %vm931, %v926, %v936
        %v941 = vsel %vm932, %v927, %v937
        %v942 = vsel %vm933, %v928, %v938
        %943 = vst [vmem:[%s325] sm:$0xff] %v939
        %944 = vst [vmem:[%s325 + $0x8] sm:$0xff] %v940
        %945 = vst [vmem:[%s325 + $0x10] sm:$0xff] %v941
        %946 = vst [vmem:[%s325 + $0x18] sm:$0xff] %v942
        %s947 = sand.u32 %s180, 1
        %s948 = scalar_lea.sflag [#allocation6], %s947
        %s949 = sand.u32 %s180, 1
        %s950 = smul.addr %s949, 32
        %s951 = scalar_lea.vmem [#allocation10], %s950
        // Predicated region
        $region57: #{tpu_custom_call.1} parent=39 // pred_check
          %p952 = pneg %p190
        $region58: #{tpu_custom_call.1} parent=39 // pred_check_branch
          %954 = sbr.rel (%p952) target = $region60
        $region59: #{tpu_custom_call.1} parent=39 // pred_region
          %s955 = smul.u32 2, %s30
          %s956 = smul.u32 2, %s31
          %s958 = ssub.s32 512, 512
          %959 = vsyncadd %s948, %s958
          %s960 = smul.addr %s955, 2
          %s961 = sadd.s32 %s956, %s960
          %s962 = smul.addr %s29, 8
          %s963 = sadd.s32 %s961, %s962
          %s964 = smul.addr %s963, 128
          %s965 = scalar_lea.hbm %s5, %s964
          %s966 = sshll.u32 %s951, 4
          %s967 = int_to_ptr.vmem [resolvable:$true] %s966
          %972 = dma.vmem_to_hbm [thread:$0]  %s967, 512, %s965, %s948, 256, 256, 16
        $region60: #{tpu_custom_call.1} parent=39 // pred_fallthru
          _
      $region40: #{tpu_custom_call.1} parent=5 // pred_fallthru
        _
      %p973 = scmp.le.s32.totalorder 2, %s19
      // Predicated region
      $region61: #{tpu_custom_call.1} parent=5 // pred_check
        %p974 = pneg %p973
      $region62: #{tpu_custom_call.1} parent=5 // pred_check_branch
        %976 = sbr.rel (%p974) target = $region64
      $region63: #{tpu_custom_call.1} parent=5 // pred_region
        %s977 = ssub.s32 %s19, 2
        // Predicated region
        $region65: #{tpu_custom_call.1} parent=63 // pred_check
          %p978 = pneg %p196
        $region66: #{tpu_custom_call.1} parent=63 // pred_check_branch
          %980 = sbr.rel (%p978) target = $region68
        $region67: #{tpu_custom_call.1} parent=63 // pred_region
          %s981 = sand.u32 %s181, 1
          %s982 = scalar_lea.sflag [#allocation6], %s981
          %s983 = sand.u32 %s181, 1
          %s984 = smul.addr %s983, 32
          %s985 = scalar_lea.vmem [#allocation10], %s984
          %986 = dma.done %s982, 512
        $region68: #{tpu_custom_call.1} parent=63 // pred_fallthru
          _
      $region64: #{tpu_custom_call.1} parent=5 // pred_fallthru
        _
    $region6: #{tpu_custom_call.1} parent=1 // loop_footer
      %s23 = sadd.s32 1, %s19
    $region7: #{tpu_custom_call.1} parent=1 // loop_footer_branch
      %18 = sbr.rel target = $region3
    $region8: #{tpu_custom_call.1} parent=1 // loop_exit
      _
    %987 = vsyncpa [#allocation5], 1
    %s988 = scalar_lea.sflag [#allocation5], 1
    %989 = vsyncpa %s988, 1
    %990 = vsyncpa [#allocation8], 1
    %s991 = scalar_lea.sflag [#allocation8], 1
    %992 = vsyncpa %s991, 1
    %993 = vsyncpa [#allocation6], 1
    %s994 = scalar_lea.sflag [#allocation6], 1
    %995 = vsyncpa %s994, 1

// kernel: tpu_custom_call.1
$region0: #{tpu_custom_call.1}
  #allocation0 [shape = 'u32[]', space=smem, size = 0x4, offset = 0x4, fixed_abs, tag = 'smem constant byte address 0x4 - core index']
  #allocation1 [shape = 'u32[144,128]{1,0:T(1,128)}', space=vmem, size = 0x12000, scoped, tag = 'internal scratch']
  #allocation2 [shape = 'f32[3,16,64]{2,1,0:T(8,128)}', space=vmem, size = 0x6000, scoped, tag = 'scratch operand']
  #allocation3 [shape = 'f32[1]{0:T(128)S(6)}', space=smem, size = 0x200, scoped, tag = 'scoped memory for tpu_custom_call.1']
  %s0 = inlined_call_operand.hbm [shape: f32[2,16,64], index: 0, kind: input, shape index: {}]
  %s1 = inlined_call_operand.hbm [shape: f32[2,3,16,16], index: 1, kind: input, shape index: {}]
  %s2 = inlined_call_operand.hbm [shape: f32[3,64,256], index: 2, kind: input, shape index: {}]
  %s3 = inlined_call_operand.vmem [shape: f32[1,256], index: 3, kind: input, shape index: {}]
  %s4 = inlined_call_operand.<no memory space> [shape: f32[1], index: 4, kind: input, shape index: {}]
  %s5 = inlined_call_operand.hbm [shape: f32[2,32,256], index: 5, kind: output, shape index: {}]
  %s6 = sld [smem:[#allocation0]]
  $region69: #{tpu_custom_call.1} parent=0
    _
  %s8 = ssub.s32 1, %s6
  %s9 = scalar_select 0, %s8, %s6
  %10 = sst [smem:[#allocation3]] %s4
  $region1: #{tpu_custom_call.1} parent=0
    #allocation4 [shape = 'u8[16384]{0}', space=vmem, size = 0x4000, scoped, tag = 'input window, operand 0']
    #allocation5 [shape = 's32[2]{0}', space=sflag, size = 0x8, scoped, tag = 'scoped memory for tpu_custom_call.1']
    #allocation6 [shape = 's32[2]{0}', space=sflag, size = 0x8, scoped, tag = 'scoped memory for tpu_custom_call.1']
    #allocation7 [shape = 'u8[49152]{0}', space=vmem, size = 0xc000, scoped, tag = 'input window, operand 1']
    #allocation8 [shape = 's32[2]{0}', space=sflag, size = 0x8, scoped, tag = 'scoped memory for tpu_custom_call.1']
    #allocation9 [shape = 'u8[196608]{0}', space=vmem, size = 0x30000, scoped, tag = 'input window, operand 2, single buffered']
    #allocation10 [shape = 'u8[32768]{0}', space=vmem, size = 0x8000, scoped, tag = 'output window, operand 0']
    %11 = vsyncpa [#allocation5], 0
    %s12 = scalar_lea.sflag [#allocation5], 1
    %13 = vsyncpa %s12, 0
    %14 = vsyncpa [#allocation8], 0
    %s15 = scalar_lea.sflag [#allocation8], 1
    %16 = vsyncpa %s15, 0
    %17 = vsyncpa [#allocation6], 0
    %s18 = scalar_lea.sflag [#allocation6], 1
    %19 = vsyncpa %s18, 0
    loop: start=0, step=1, limit=6
    $region2: #{tpu_custom_call.1} parent=1 // loop_pre_header
      _
    $region3: #{tpu_custom_call.1} parent=1 // loop_header
      %s21 = sphi 0, %s25
      %p22 = scmp.ge.s32.totalorder %s21, 6
      %s28 = sphi 0, %s47
      %s29 = sphi 0, %s43
      %s30 = sphi 0, %s39
      %s31 = sphi 0, %s28
      %s32 = sphi 0, %s29
      %s33 = sphi 0, %s30
      %s34 = sphi 0, %s31
      %s35 = sphi 0, %s32
      %s36 = sphi 0, %s33
      %s50 = sphi 0, %s52
      %s53 = sphi 0, %s50
      %s54 = sphi 0, %s53
      %s70 = sphi 0, %s54
      %s76 = sphi 0, %s78
      %s79 = sphi 0, %s76
      %s80 = sphi 0, %s79
      %s96 = sphi 0, %s80
      %s102 = sphi 0, %s104
      %s105 = sphi 0, %s102
      %s106 = sphi 0, %s105
      %s122 = sphi 0, %s106
      %s128 = sphi 0, %s130
      %s131 = sphi 0, %s128
      %s132 = sphi 0, %s131
      %s148 = sphi 0, %s132
      %s152 = sphi 0, %s152
      %s154 = sphi 0, %s152
      %s155 = sphi 0, %s154
      %s169 = sphi 0, %s155
      %s179 = sphi 0, %s181
      %s182 = sphi 0, %s179
      %s183 = sphi 0, %s182
      %s199 = sphi 0, %s183
    $region4: #{tpu_custom_call.1} parent=1 // loop_header_branch
      %24 = sbr.rel (%p22) target = $region8
    $region5: #{tpu_custom_call.1} parent=1 // loop_body
      %s26 = ssub.s32 %s21, 1
      %s27 = ssub.s32 %s21, 2
      %s37 = sadd.s32 1, %s30
      %p38 = scmp.ge.s32.totalorder %s37, 1
      %s39 = scalar_select %p38, 0, %s37
      %s40 = sadd.s32 1, %s29
      %s41 = scalar_select %p38, %s40, %s29
      %p42 = scmp.ge.s32.totalorder %s41, 2
      %s43 = scalar_select %p42, 0, %s41
      %s44 = sadd.s32 1, %s28
      %s45 = scalar_select %p42, %s44, %s28
      %p46 = scmp.ge.s32.totalorder %s45, 2
      %s47 = scalar_select %p46, 0, %s45
      %s48 = ssub.s32 %s28, %s47
      %p49 = scmp.eq.s32.totalorder %s48, 0
      %s51 = sadd.s32 %s50, 1
      %s52 = scalar_select %p49, %s50, %s51
      %p55 = pneg %p49
      %p56 = scmp.eq.s32.totalorder %s21, 3
      %p57 = por %p55, %p56
      %p58 = scmp.ne.s32.totalorder %s50, %s53
      %p59 = scmp.eq.s32.totalorder %s21, 0
      %p60 = por %p58, %p59
      %p61 = scmp.ne.s32.totalorder %s50, %s53
      %p62 = scmp.eq.s32.totalorder %s26, 3
      %p63 = por %p61, %p62
      %p64 = scmp.ne.s32.totalorder %s53, %s54
      %p65 = scmp.eq.s32.totalorder %s26, 0
      %p66 = por %p64, %p65
      %p67 = scmp.ne.s32.totalorder %s53, %s54
      %p68 = scmp.eq.s32.totalorder %s27, 3
      %p69 = por %p67, %p68
      %p71 = scmp.ne.s32.totalorder %s54, %s70
      %p72 = scmp.eq.s32.totalorder %s27, 0
      %p73 = por %p71, %p72
      %s74 = ssub.s32 %s29, %s43
      %p75 = scmp.eq.s32.totalorder %s74, 0
      %s77 = sadd.s32 %s76, 1
      %s78 = scalar_select %p75, %s76, %s77
      %p81 = pneg %p75
      %p82 = scmp.eq.s32.totalorder %s21, 3
      %p83 = por %p81, %p82
      %p84 = scmp.ne.s32.totalorder %s76, %s79
      %p85 = scmp.eq.s32.totalorder %s21, 0
      %p86 = por %p84, %p85
      %p87 = scmp.ne.s32.totalorder %s76, %s79
      %p88 = scmp.eq.s32.totalorder %s26, 3
      %p89 = por %p87, %p88
      %p90 = scmp.ne.s32.totalorder %s79, %s80
      %p91 = scmp.eq.s32.totalorder %s26, 0
      %p92 = por %p90, %p91
      %p93 = scmp.ne.s32.totalorder %s79, %s80
      %p94 = scmp.eq.s32.totalorder %s27, 3
      %p95 = por %p93, %p94
      %p97 = scmp.ne.s32.totalorder %s80, %s96
      %p98 = scmp.eq.s32.totalorder %s27, 0
      %p99 = por %p97, %p98
      %s100 = ssub.s32 %s30, %s39
      %p101 = scmp.eq.s32.totalorder %s100, 0
      %s103 = sadd.s32 %s102, 1
      %s104 = scalar_select %p101, %s102, %s103
      %p107 = pneg %p101
      %p108 = scmp.eq.s32.totalorder %s21, 3
      %p109 = por %p107, %p108
      %p110 = scmp.ne.s32.totalorder %s102, %s105
      %p111 = scmp.eq.s32.totalorder %s21, 0
      %p112 = por %p110, %p111
      %p113 = scmp.ne.s32.totalorder %s102, %s105
      %p114 = scmp.eq.s32.totalorder %s26, 3
      %p115 = por %p113, %p114
      %p116 = scmp.ne.s32.totalorder %s105, %s106
      %p117 = scmp.eq.s32.totalorder %s26, 0
      %p118 = por %p116, %p117
      %p119 = scmp.ne.s32.totalorder %s105, %s106
      %p120 = scmp.eq.s32.totalorder %s27, 3
      %p121 = por %p119, %p120
      %p123 = scmp.ne.s32.totalorder %s106, %s122
      %p124 = scmp.eq.s32.totalorder %s27, 0
      %p125 = por %p123, %p124
      %s126 = ssub.s32 %s30, %s39
      %p127 = scmp.eq.s32.totalorder %s126, 0
      %s129 = sadd.s32 %s128, 1
      %s130 = scalar_select %p127, %s128, %s129
      %p133 = pneg %p127
      %p134 = scmp.eq.s32.totalorder %s21, 3
      %p135 = por %p133, %p134
      %p136 = scmp.ne.s32.totalorder %s128, %s131
      %p137 = scmp.eq.s32.totalorder %s21, 0
      %p138 = por %p136, %p137
      %p139 = scmp.ne.s32.totalorder %s128, %s131
      %p140 = scmp.eq.s32.totalorder %s26, 3
      %p141 = por %p139, %p140
      %p142 = scmp.ne.s32.totalorder %s131, %s132
      %p143 = scmp.eq.s32.totalorder %s26, 0
      %p144 = por %p142, %p143
      %p145 = scmp.ne.s32.totalorder %s131, %s132
      %p146 = scmp.eq.s32.totalorder %s27, 3
      %p147 = por %p145, %p146
      %p149 = scmp.ne.s32.totalorder %s132, %s148
      %p150 = scmp.eq.s32.totalorder %s27, 0
      %p151 = por %p149, %p150
      %s153 = sadd.s32 %s152, 1
      %p156 = scmp.eq.s32.totalorder %s21, 3
      %p157 = scmp.ne.s32.totalorder %s152, %s154
      %p158 = scmp.eq.s32.totalorder %s21, 0
      %p159 = por %p157, %p158
      %p160 = scmp.ne.s32.totalorder %s152, %s154
      %p161 = scmp.eq.s32.totalorder %s26, 3
      %p162 = por %p160, %p161
      %p163 = scmp.ne.s32.totalorder %s154, %s155
      %p164 = scmp.eq.s32.totalorder %s26, 0
      %p165 = por %p163, %p164
      %p166 = scmp.ne.s32.totalorder %s154, %s155
      %p167 = scmp.eq.s32.totalorder %s27, 3
      %p168 = por %p166, %p167
      %p170 = scmp.ne.s32.totalorder %s155, %s169
      %p171 = scmp.eq.s32.totalorder %s27, 0
      %p172 = por %p170, %p171
      %s173 = ssub.s32 %s28, %s47
      %s174 = ssub.s32 %s29, %s43
      %s175 = sor.u32 %s173, %s174
      %s176 = ssub.s32 %s30, %s39
      %s177 = sor.u32 %s175, %s176
      %p178 = scmp.eq.s32.totalorder %s177, 0
      %s180 = sadd.s32 %s179, 1
      %s181 = scalar_select %p178, %s179, %s180
      %p184 = pneg %p178
      %p185 = scmp.eq.s32.totalorder %s21, 3
      %p186 = por %p184, %p185
      %p187 = scmp.ne.s32.totalorder %s179, %s182
      %p188 = scmp.eq.s32.totalorder %s21, 0
      %p189 = por %p187, %p188
      %p190 = scmp.ne.s32.totalorder %s179, %s182
      %p191 = scmp.eq.s32.totalorder %s26, 3
      %p192 = por %p190, %p191
      %p193 = scmp.ne.s32.totalorder %s182, %s183
      %p194 = scmp.eq.s32.totalorder %s26, 0
      %p195 = por %p193, %p194
      %p196 = scmp.ne.s32.totalorder %s182, %s183
      %p197 = scmp.eq.s32.totalorder %s27, 3
      %p198 = por %p196, %p197
      %p200 = scmp.ne.s32.totalorder %s183, %s199
      %p201 = scmp.eq.s32.totalorder %s27, 0
      %p202 = por %p200, %p201
      %p203 = scmp.le.s32.totalorder 1, %s21
      %p204 = scmp.lt.s32.totalorder %s21, 5
      %p205 = pnand %p203, %p204
      %p206 = pneg %p205
      // Predicated region
      $region9: #{tpu_custom_call.1} parent=5 // pred_check
        _
      $region10: #{tpu_custom_call.1} parent=5 // pred_check_branch
        %208 = sbr.rel (%p205) target = $region12
      $region11: #{tpu_custom_call.1} parent=5 // pred_region
        %s209 = ssub.s32 %s21, 1
        // Predicated region
        $region13: #{tpu_custom_call.1} parent=11 // pred_check
          %p210 = pneg %p118
        $region14: #{tpu_custom_call.1} parent=11 // pred_check_branch
          %212 = sbr.rel (%p210) target = $region16
        $region15: #{tpu_custom_call.1} parent=11 // pred_region
          %s213 = smul.u32 2, %s33
          %s215 = ssub.s32 6144, 6144
          %216 = vsyncadd [#allocation8], %s215
          %s217 = smul.addr %s213, 128
          %s218 = scalar_lea.hbm %s2, %s217
          %s219 = sshll.u32 [#allocation9], 4
          %s220 = int_to_ptr.vmem [resolvable:$true] %s219
          %225 = dma.hbm_to_vmem [thread:$0]  %s218, 6144, %s220, [#allocation8], 256, 256, 16
        $region16: #{tpu_custom_call.1} parent=11 // pred_fallthru
          _
        // Predicated region
        $region17: #{tpu_custom_call.1} parent=11 // pred_check
          %p226 = pneg %p144
        $region18: #{tpu_custom_call.1} parent=11 // pred_check_branch
          %228 = sbr.rel (%p226) target = $region20
        $region19: #{tpu_custom_call.1} parent=11 // pred_region
          %s229 = smul.u32 2, %s33
          %p230 = scmp.lt.s32.totalorder %s229, 1
          %s231 = scalar_select %p230, %s229, 1
          %s232 = scalar_lea.vmem %s3, %s231
          %s233 = smul.u32 2, %s33
        $region20: #{tpu_custom_call.1} parent=11 // pred_fallthru
          _
        // Predicated region
        $region21: #{tpu_custom_call.1} parent=11 // pred_check
          %p234 = pneg %p165
        $region22: #{tpu_custom_call.1} parent=11 // pred_check_branch
          %236 = sbr.rel (%p234) target = $region24
        $region23: #{tpu_custom_call.1} parent=11 // pred_region
          _
        $region24: #{tpu_custom_call.1} parent=11 // pred_fallthru
          _
      $region12: #{tpu_custom_call.1} parent=5 // pred_fallthru
        _
      %p237 = scmp.lt.s32.totalorder %s21, 4
      // Predicated region
      $region25: #{tpu_custom_call.1} parent=5 // pred_check
        %p238 = pneg %p237
      $region26: #{tpu_custom_call.1} parent=5 // pred_check_branch
        %240 = sbr.rel (%p238) target = $region28
      $region27: #{tpu_custom_call.1} parent=5 // pred_region
        // Predicated region
        $region29: #{tpu_custom_call.1} parent=27 // pred_check
          %p241 = pneg %p60
        $region30: #{tpu_custom_call.1} parent=27 // pred_check_branch
          %243 = sbr.rel (%p241) target = $region32
        $region31: #{tpu_custom_call.1} parent=27 // pred_region
          %s244 = sand.u32 %s50, 1
          %s245 = scalar_lea.sflag [#allocation5], %s244
          %s246 = sand.u32 %s50, 1
          %s247 = smul.addr %s246, 16
          %s248 = scalar_lea.vmem [#allocation4], %s247
          %s250 = ssub.s32 256, 256
          %251 = vsyncadd %s245, %s250
          %s252 = smul.addr %s28, 2
          %s253 = smul.addr %s252, 128
          %s254 = scalar_lea.hbm %s0, %s253
          %s255 = sshll.u32 %s248, 4
          %s256 = int_to_ptr.vmem [resolvable:$true] %s255
          %261 = dma.hbm_to_vmem [thread:$0]  %s254, 256, %s256, %s245, 128, 128, 8
        $region32: #{tpu_custom_call.1} parent=27 // pred_fallthru
          _
        // Predicated region
        $region33: #{tpu_custom_call.1} parent=27 // pred_check
          %p262 = pneg %p86
        $region34: #{tpu_custom_call.1} parent=27 // pred_check_branch
          %264 = sbr.rel (%p262) target = $region36
        $region35: #{tpu_custom_call.1} parent=27 // pred_region
          %s265 = sand.u32 %s21, 1
          %s266 = scalar_lea.sflag [#allocation8], %s265
          %s267 = sand.u32 %s76, 1
          %s268 = smul.addr %s267, 48
          %s269 = scalar_lea.vmem [#allocation7], %s268
          %s271 = ssub.s32 768, 768
          %272 = vsyncadd %s266, %s271
          %s273 = smul.addr %s29, 6
          %s274 = smul.addr %s273, 128
          %s275 = scalar_lea.hbm %s1, %s274
          %s276 = sshll.u32 %s269, 4
          %s277 = int_to_ptr.vmem [resolvable:$true] %s276
          %282 = dma.hbm_to_vmem [thread:$0]  %s275, 768, %s277, %s266, 128, 128, 8
        $region36: #{tpu_custom_call.1} parent=27 // pred_fallthru
          _
      $region28: #{tpu_custom_call.1} parent=5 // pred_fallthru
        _
      %p283 = scmp.le.s32.totalorder 1, %s21
      %p284 = scmp.lt.s32.totalorder %s21, 5
      %p285 = pnand %p283, %p284
      %p286 = pneg %p285
      // Predicated region
      $region37: #{tpu_custom_call.1} parent=5 // pred_check
        _
      $region38: #{tpu_custom_call.1} parent=5 // pred_check_branch
        %288 = sbr.rel (%p285) target = $region40
      $region39: #{tpu_custom_call.1} parent=5 // pred_region
        %s289 = ssub.s32 %s21, 1
        %s290 = sand.u32 %s53, 1
        %s291 = scalar_lea.sflag [#allocation5], %s290
        %s292 = sand.u32 %s53, 1
        %s293 = smul.addr %s292, 16
        %s294 = scalar_lea.vmem [#allocation4], %s293
        // Predicated region
        $region41: #{tpu_custom_call.1} parent=39 // pred_check
          %p295 = pneg %p66
        $region42: #{tpu_custom_call.1} parent=39 // pred_check_branch
          %297 = sbr.rel (%p295) target = $region44
        $region43: #{tpu_custom_call.1} parent=39 // pred_region
          %298 = dma.done %s291, 256
        $region44: #{tpu_custom_call.1} parent=39 // pred_fallthru
          _
        %s299 = sand.u32 %s26, 1
        %s300 = scalar_lea.sflag [#allocation8], %s299
        %s301 = sand.u32 %s79, 1
        %s302 = smul.addr %s301, 48
        %s303 = scalar_lea.vmem [#allocation7], %s302
        // Predicated region
        $region45: #{tpu_custom_call.1} parent=39 // pred_check
          %p304 = pneg %p92
        $region46: #{tpu_custom_call.1} parent=39 // pred_check_branch
          %306 = sbr.rel (%p304) target = $region48
        $region47: #{tpu_custom_call.1} parent=39 // pred_region
          %307 = dma.done %s300, 768
        $region48: #{tpu_custom_call.1} parent=39 // pred_fallthru
          _
        // Predicated region
        $region49: #{tpu_custom_call.1} parent=39 // pred_check
          %p308 = pneg %p118
        $region50: #{tpu_custom_call.1} parent=39 // pred_check_branch
          %310 = sbr.rel (%p308) target = $region52
        $region51: #{tpu_custom_call.1} parent=39 // pred_region
          %311 = dma.done [#allocation8], 6144
        $region52: #{tpu_custom_call.1} parent=39 // pred_fallthru
          _
        %s312 = sand.u32 %s53, 1
        %s313 = scalar_lea.sflag [#allocation5], %s312
        %s314 = sand.u32 %s53, 1
        %s315 = smul.addr %s314, 16
        %s316 = scalar_lea.vmem [#allocation4], %s315
        %p317 = pneg %p66
        %p318 = pneg %p63
        %s319 = sand.u32 %s26, 1
        %s320 = scalar_lea.sflag [#allocation8], %s319
        %s321 = sand.u32 %s79, 1
        %s322 = smul.addr %s321, 48
        %s323 = scalar_lea.vmem [#allocation7], %s322
        %p324 = pneg %p92
        %p325 = pneg %p89
        %p326 = pneg %p118
        %p327 = pneg %p115
        %s328 = smul.u32 2, %s33
        %p329 = scmp.lt.s32.totalorder %s328, 1
        %s330 = scalar_select %p329, %s328, 1
        %s331 = scalar_lea.vmem %s3, %s330
        %p332 = pneg %p144
        %p333 = pneg %p141
        %p334 = pneg %p165
        %p335 = pneg %p162
        %p336 = pneg %p195
        %p337 = pneg %p192
        %s338 = sand.u32 %s182, 1
        %s339 = scalar_lea.sflag [#allocation6], %s338
        %s340 = sand.u32 %s182, 1
        %s341 = smul.addr %s340, 32
        %s342 = scalar_lea.vmem [#allocation10], %s341
        %s343 = smul.u32 2, %s33
        %s344 = smul.u32 2, %s33
        %p345 = scmp.lt.s32.totalorder %s344, 1
        %s346 = scalar_select %p345, %s344, 1
        %s347 = scalar_lea.vmem %s3, %s346
        %s348 = smul.u32 2, %s33
        %s349 = smul.u32 2, %s32
        %s350 = smul.u32 2, %s33
        %p351 = scmp.eq.s32.totalorder %s33, 0
        // Predicated region
        $region53: #{tpu_custom_call.1} parent=39 // pred_check
          %p352 = pneg %p351
        $region54: #{tpu_custom_call.1} parent=39 // pred_check_branch
          %354 = sbr.rel (%p352) target = $region56
        $region55: #{tpu_custom_call.1} parent=39 // pred_region
          %v355 = vld [vmem:[%s294] sm:$0xff]
          %v356 = vld [vmem:[%s294 + $0x8] sm:$0xff]
          %v357 = vld [vmem:[%s303] sm:$0xff]
          %v358 = vld [vmem:[%s303 + $0x8] sm:$0xff]
          %vm359 = vcmask 130048
          %v361 = vsel %vm359, %v357, 0
          %v364 = vsel %vm359, %v358, 0
          %366 = vmatprep.subr.mxu0 0.0
          %367 = vmatpush1.msra.mxu0 0.0
          %368 = vmatprep.subr.mxu0 0.0
          %369 = vmatpush1.msra.mxu0 0.0
          %370 = vmatprep.subr.mxu0 0.0
          %371 = vmatpush1.msra.mxu0 0.0
          %372 = vmatprep.subr.mxu0 0.0
          %373 = vmatpush1.msra.mxu0 0.0
          %374 = vmatprep.subr.mxu0 0.0
          %375 = vmatpush1.msra.mxu0 0.0
          %376 = vmatprep.subr.mxu0 0.0
          %377 = vmatpush1.msra.mxu0 0.0
          %378 = vmatprep.subr.mxu0 0.0
          %379 = vmatpush1.msra.mxu0 0.0
          %380 = vmatprep.subr.mxu0 0.0
          %381 = vmatpush1.msra.mxu0 0.0
          %382 = vmatprep.subr.mxu0 0.0
          %383 = vmatpush1.msra.mxu0 0.0
          %384 = vmatprep.subr.mxu0 0.0
          %385 = vmatpush1.msra.mxu0 0.0
          %386 = vmatprep.subr.mxu0 0.0
          %387 = vmatpush1.msra.mxu0 0.0
          %388 = vmatprep.subr.mxu0 0.0
          %389 = vmatpush1.msra.mxu0 0.0
          %390 = vmatprep.subr.mxu0 0.0
          %391 = vmatpush1.msra.mxu0 0.0
          %392 = vmatprep.subr.mxu0 0.0
          %393 = vmatpush1.msra.mxu0 0.0
          %394 = vmatprep.subr.mxu0 0.0
          %395 = vmatpush1.msra.mxu0 %v356
          %396 = vmatprep.subr.mxu0 0.0
          %397 = vmatpush1.msra.mxu0 %v355
          %398 = vmatprep.subr.mxu0 0.0
          %399 = vmatpush2.msra.mxu0 0.0
          %400 = vmatprep.subr.mxu0 0.0
          %401 = vmatpush2.msra.mxu0 0.0
          %402 = vmatprep.subr.mxu0 0.0
          %403 = vmatpush2.msra.mxu0 0.0
          %404 = vmatprep.subr.mxu0 0.0
          %405 = vmatpush2.msra.mxu0 0.0
          %406 = vmatprep.subr.mxu0 0.0
          %407 = vmatpush2.msra.mxu0 0.0
          %408 = vmatprep.subr.mxu0 0.0
          %409 = vmatpush2.msra.mxu0 0.0
          %410 = vmatprep.subr.mxu0 0.0
          %411 = vmatpush2.msra.mxu0 0.0
          %412 = vmatprep.subr.mxu0 0.0
          %413 = vmatpush2.msra.mxu0 0.0
          %414 = vmatprep.subr.mxu0 0.0
          %415 = vmatpush2.msra.mxu0 0.0
          %416 = vmatprep.subr.mxu0 0.0
          %417 = vmatpush2.msra.mxu0 0.0
          %418 = vmatprep.subr.mxu0 0.0
          %419 = vmatpush2.msra.mxu0 0.0
          %420 = vmatprep.subr.mxu0 0.0
          %421 = vmatpush2.msra.mxu0 0.0
          %422 = vmatprep.subr.mxu0 0.0
          %423 = vmatpush2.msra.mxu0 0.0
          %424 = vmatprep.subr.mxu0 0.0
          %425 = vmatpush2.msra.mxu0 0.0
          %426 = vmatprep.subr.mxu0 0.0
          %427 = vmatpush2.msra.mxu0 0.0
          %428 = vmatprep.subr.mxu0 0.0
          %429 = vmatpush2.msra.mxu0 0.0
          %430 = vmatprep.mubr.f32.mxu0 0.0
          %431 = vmatmul.mubr.f32.gmra.mxu0 %v361
          %v432 = vpop.f32.mrf.mxu0
          %v433 = vadd.f32 0.0, %v432
          %v434 = vpop.f32.mrf.mxu0
          %435 = vmatprep.mubr.f32.mxu0 0.0
          %436 = vmatmul.mubr.f32.gmra.mxu0 %v364
          %v437 = vpop.f32.mrf.mxu0
          %v438 = vadd.f32 0.0, %v437
          %v439 = vpop.f32.mrf.mxu0
          %440 = vdwg.mxu0
          %vm441 = vcmask 523264
          %442 = vst.msk [vmem:[#allocation2] sm:$0xff] %vm441, %v433
          %443 = vst.msk [vmem:[#allocation2 + $0x8] sm:$0xff] %vm441, %v438
          %s444 = scalar_lea.vmem %s303, 16 [#allocation7]
          %v445 = vld [vmem:[%s444] sm:$0xff]
          %v446 = vld [vmem:[%s444 + $0x8] sm:$0xff]
          %v448 = vsel %vm359, %v445, 0
          %v451 = vsel %vm359, %v446, 0
          %453 = vmatprep.subr.mxu0 0.0
          %454 = vmatpush1.msra.mxu0 0.0
          %455 = vmatprep.subr.mxu0 0.0
          %456 = vmatpush1.msra.mxu0 0.0
          %457 = vmatprep.subr.mxu0 0.0
          %458 = vmatpush1.msra.mxu0 0.0
          %459 = vmatprep.subr.mxu0 0.0
          %460 = vmatpush1.msra.mxu0 0.0
          %461 = vmatprep.subr.mxu0 0.0
          %462 = vmatpush1.msra.mxu0 0.0
          %463 = vmatprep.subr.mxu0 0.0
          %464 = vmatpush1.msra.mxu0 0.0
          %465 = vmatprep.subr.mxu0 0.0
          %466 = vmatpush1.msra.mxu0 0.0
          %467 = vmatprep.subr.mxu0 0.0
          %468 = vmatpush1.msra.mxu0 0.0
          %469 = vmatprep.subr.mxu0 0.0
          %470 = vmatpush1.msra.mxu0 0.0
          %471 = vmatprep.subr.mxu0 0.0
          %472 = vmatpush1.msra.mxu0 0.0
          %473 = vmatprep.subr.mxu0 0.0
          %474 = vmatpush1.msra.mxu0 0.0
          %475 = vmatprep.subr.mxu0 0.0
          %476 = vmatpush1.msra.mxu0 0.0
          %477 = vmatprep.subr.mxu0 0.0
          %478 = vmatpush1.msra.mxu0 0.0
          %479 = vmatprep.subr.mxu0 0.0
          %480 = vmatpush1.msra.mxu0 0.0
          %481 = vmatprep.subr.mxu0 0.0
          %482 = vmatpush1.msra.mxu0 %v356
          %483 = vmatprep.subr.mxu0 0.0
          %484 = vmatpush1.msra.mxu0 %v355
          %485 = vmatprep.subr.mxu0 0.0
          %486 = vmatpush2.msra.mxu0 0.0
          %487 = vmatprep.subr.mxu0 0.0
          %488 = vmatpush2.msra.mxu0 0.0
          %489 = vmatprep.subr.mxu0 0.0
          %490 = vmatpush2.msra.mxu0 0.0
          %491 = vmatprep.subr.mxu0 0.0
          %492 = vmatpush2.msra.mxu0 0.0
          %493 = vmatprep.subr.mxu0 0.0
          %494 = vmatpush2.msra.mxu0 0.0
          %495 = vmatprep.subr.mxu0 0.0
          %496 = vmatpush2.msra.mxu0 0.0
          %497 = vmatprep.subr.mxu0 0.0
          %498 = vmatpush2.msra.mxu0 0.0
          %499 = vmatprep.subr.mxu0 0.0
          %500 = vmatpush2.msra.mxu0 0.0
          %501 = vmatprep.subr.mxu0 0.0
          %502 = vmatpush2.msra.mxu0 0.0
          %503 = vmatprep.subr.mxu0 0.0
          %504 = vmatpush2.msra.mxu0 0.0
          %505 = vmatprep.subr.mxu0 0.0
          %506 = vmatpush2.msra.mxu0 0.0
          %507 = vmatprep.subr.mxu0 0.0
          %508 = vmatpush2.msra.mxu0 0.0
          %509 = vmatprep.subr.mxu0 0.0
          %510 = vmatpush2.msra.mxu0 0.0
          %511 = vmatprep.subr.mxu0 0.0
          %512 = vmatpush2.msra.mxu0 0.0
          %513 = vmatprep.subr.mxu0 0.0
          %514 = vmatpush2.msra.mxu0 0.0
          %515 = vmatprep.subr.mxu0 0.0
          %516 = vmatpush2.msra.mxu0 0.0
          %517 = vmatprep.mubr.f32.mxu0 0.0
          %518 = vmatmul.mubr.f32.gmra.mxu0 %v448
          %v519 = vpop.f32.mrf.mxu0
          %v520 = vadd.f32 0.0, %v519
          %v521 = vpop.f32.mrf.mxu0
          %522 = vmatprep.mubr.f32.mxu0 0.0
          %523 = vmatmul.mubr.f32.gmra.mxu0 %v451
          %v524 = vpop.f32.mrf.mxu0
          %v525 = vadd.f32 0.0, %v524
          %v526 = vpop.f32.mrf.mxu0
          %527 = vdwg.mxu0
          %s528 = scalar_lea.vmem [#allocation2], 16
          %529 = vst.msk [vmem:[%s528] sm:$0xff] %vm441, %v520
          %530 = vst.msk [vmem:[%s528 + $0x8] sm:$0xff] %vm441, %v525
          %s531 = scalar_lea.vmem %s303, 32 [#allocation7]
          %v532 = vld [vmem:[%s531] sm:$0xff]
          %v533 = vld [vmem:[%s531 + $0x8] sm:$0xff]
          %v535 = vsel %vm359, %v532, 0
          %v538 = vsel %vm359, %v533, 0
          %540 = vmatprep.subr.mxu0 0.0
          %541 = vmatpush1.msra.mxu0 0.0
          %542 = vmatprep.subr.mxu0 0.0
          %543 = vmatpush1.msra.mxu0 0.0
          %544 = vmatprep.subr.mxu0 0.0
          %545 = vmatpush1.msra.mxu0 0.0
          %546 = vmatprep.subr.mxu0 0.0
          %547 = vmatpush1.msra.mxu0 0.0
          %548 = vmatprep.subr.mxu0 0.0
          %549 = vmatpush1.msra.mxu0 0.0
          %550 = vmatprep.subr.mxu0 0.0
          %551 = vmatpush1.msra.mxu0 0.0
          %552 = vmatprep.subr.mxu0 0.0
          %553 = vmatpush1.msra.mxu0 0.0
          %554 = vmatprep.subr.mxu0 0.0
          %555 = vmatpush1.msra.mxu0 0.0
          %556 = vmatprep.subr.mxu0 0.0
          %557 = vmatpush1.msra.mxu0 0.0
          %558 = vmatprep.subr.mxu0 0.0
          %559 = vmatpush1.msra.mxu0 0.0
          %560 = vmatprep.subr.mxu0 0.0
          %561 = vmatpush1.msra.mxu0 0.0
          %562 = vmatprep.subr.mxu0 0.0
          %563 = vmatpush1.msra.mxu0 0.0
          %564 = vmatprep.subr.mxu0 0.0
          %565 = vmatpush1.msra.mxu0 0.0
          %566 = vmatprep.subr.mxu0 0.0
          %567 = vmatpush1.msra.mxu0 0.0
          %568 = vmatprep.subr.mxu0 0.0
          %569 = vmatpush1.msra.mxu0 %v356
          %570 = vmatprep.subr.mxu0 0.0
          %571 = vmatpush1.msra.mxu0 %v355
          %572 = vmatprep.subr.mxu0 0.0
          %573 = vmatpush2.msra.mxu0 0.0
          %574 = vmatprep.subr.mxu0 0.0
          %575 = vmatpush2.msra.mxu0 0.0
          %576 = vmatprep.subr.mxu0 0.0
          %577 = vmatpush2.msra.mxu0 0.0
          %578 = vmatprep.subr.mxu0 0.0
          %579 = vmatpush2.msra.mxu0 0.0
          %580 = vmatprep.subr.mxu0 0.0
          %581 = vmatpush2.msra.mxu0 0.0
          %582 = vmatprep.subr.mxu0 0.0
          %583 = vmatpush2.msra.mxu0 0.0
          %584 = vmatprep.subr.mxu0 0.0
          %585 = vmatpush2.msra.mxu0 0.0
          %586 = vmatprep.subr.mxu0 0.0
          %587 = vmatpush2.msra.mxu0 0.0
          %588 = vmatprep.subr.mxu0 0.0
          %589 = vmatpush2.msra.mxu0 0.0
          %590 = vmatprep.subr.mxu0 0.0
          %591 = vmatpush2.msra.mxu0 0.0
          %592 = vmatprep.subr.mxu0 0.0
          %593 = vmatpush2.msra.mxu0 0.0
          %594 = vmatprep.subr.mxu0 0.0
          %595 = vmatpush2.msra.mxu0 0.0
          %596 = vmatprep.subr.mxu0 0.0
          %597 = vmatpush2.msra.mxu0 0.0
          %598 = vmatprep.subr.mxu0 0.0
          %599 = vmatpush2.msra.mxu0 0.0
          %600 = vmatprep.subr.mxu0 0.0
          %601 = vmatpush2.msra.mxu0 0.0
          %602 = vmatprep.subr.mxu0 0.0
          %603 = vmatpush2.msra.mxu0 0.0
          %604 = vmatprep.mubr.f32.mxu0 0.0
          %605 = vmatmul.mubr.f32.gmra.mxu0 %v535
          %v606 = vpop.f32.mrf.mxu0
          %v607 = vadd.f32 0.0, %v606
          %v608 = vpop.f32.mrf.mxu0
          %609 = vmatprep.mubr.f32.mxu0 0.0
          %610 = vmatmul.mubr.f32.gmra.mxu0 %v538
          %v611 = vpop.f32.mrf.mxu0
          %v612 = vadd.f32 0.0, %v611
          %v613 = vpop.f32.mrf.mxu0
          %614 = vdwg.mxu0
          %s615 = scalar_lea.vmem [#allocation2], 32
          %616 = vst.msk [vmem:[%s615] sm:$0xff] %vm441, %v607
          %617 = vst.msk [vmem:[%s615 + $0x8] sm:$0xff] %vm441, %v612
        $region56: #{tpu_custom_call.1} parent=39 // pred_fallthru
          _
        %v618 = vld [vmem:[#allocation2] sm:$0xff]
        %v619 = vld [vmem:[#allocation2 + $0x8] sm:$0xff]
        %v620 = vld [vmem:[#allocation9] sm:$0xff]
        %v621 = vld [vmem:[#allocation9 + $0x8] sm:$0xff]
        %v622 = vld [vmem:[#allocation9 + $0x10] sm:$0xff]
        %v623 = vld [vmem:[#allocation9 + $0x18] sm:$0xff]
        %v624 = vld [vmem:[#allocation9 + $0x20] sm:$0xff]
        %v625 = vld [vmem:[#allocation9 + $0x28] sm:$0xff]
        %v626 = vld [vmem:[#allocation9 + $0x30] sm:$0xff]
        %v627 = vld [vmem:[#allocation9 + $0x38] sm:$0xff]
        %v628 = vld [vmem:[#allocation9 + $0x40] sm:$0xff]
        %v629 = vld [vmem:[#allocation9 + $0x48] sm:$0xff]
        %v630 = vld [vmem:[#allocation9 + $0x50] sm:$0xff]
        %v631 = vld [vmem:[#allocation9 + $0x58] sm:$0xff]
        %v632 = vld [vmem:[#allocation9 + $0x60] sm:$0xff]
        %v633 = vld [vmem:[#allocation9 + $0x68] sm:$0xff]
        %v634 = vld [vmem:[#allocation9 + $0x70] sm:$0xff]
        %v635 = vld [vmem:[#allocation9 + $0x78] sm:$0xff]
        %s636 = scalar_lea.vmem [#allocation2], 16
        %v637 = vld [vmem:[%s636] sm:$0xff]
        %v638 = vld [vmem:[%s636 + $0x8] sm:$0xff]
        %s639 = scalar_lea.vmem [#allocation9], 128
        %v640 = vld [vmem:[%s639] sm:$0xff]
        %v641 = vld [vmem:[%s639 + $0x8] sm:$0xff]
        %v642 = vld [vmem:[%s639 + $0x10] sm:$0xff]
        %v643 = vld [vmem:[%s639 + $0x18] sm:$0xff]
        %v644 = vld [vmem:[%s639 + $0x20] sm:$0xff]
        %v645 = vld [vmem:[%s639 + $0x28] sm:$0xff]
        %v646 = vld [vmem:[%s639 + $0x30] sm:$0xff]
        %v647 = vld [vmem:[%s639 + $0x38] sm:$0xff]
        %v648 = vld [vmem:[%s639 + $0x40] sm:$0xff]
        %v649 = vld [vmem:[%s639 + $0x48] sm:$0xff]
        %v650 = vld [vmem:[%s639 + $0x50] sm:$0xff]
        %v651 = vld [vmem:[%s639 + $0x58] sm:$0xff]
        %v652 = vld [vmem:[%s639 + $0x60] sm:$0xff]
        %v653 = vld [vmem:[%s639 + $0x68] sm:$0xff]
        %v654 = vld [vmem:[%s639 + $0x70] sm:$0xff]
        %v655 = vld [vmem:[%s639 + $0x78] sm:$0xff]
        %vm656 = vcmask 523264
        %v658 = vsel %vm656, %v637, 0
        %v661 = vsel %vm656, %v638, 0
        %663 = vmatprep.subr.mxu0 0.0
        %664 = vmatpush1.msra.mxu0 0.0
        %665 = vmatprep.subr.mxu0 0.0
        %666 = vmatpush1.msra.mxu0 0.0
        %667 = vmatprep.subr.mxu0 0.0
        %668 = vmatpush1.msra.mxu0 0.0
        %669 = vmatprep.subr.mxu0 0.0
        %670 = vmatpush1.msra.mxu0 0.0
        %671 = vmatprep.subr.mxu0 0.0
        %672 = vmatpush1.msra.mxu0 0.0
        %673 = vmatprep.subr.mxu0 0.0
        %674 = vmatpush1.msra.mxu0 0.0
        %675 = vmatprep.subr.mxu0 0.0
        %676 = vmatpush1.msra.mxu0 0.0
        %677 = vmatprep.subr.mxu0 0.0
        %678 = vmatpush1.msra.mxu0 0.0
        %679 = vmatprep.subr.mxu0 %v655
        %680 = vmatpush1.msra.mxu0 %v654
        %681 = vmatprep.subr.mxu0 %v653
        %682 = vmatpush1.msra.mxu0 %v652
        %683 = vmatprep.subr.mxu0 %v651
        %684 = vmatpush1.msra.mxu0 %v650
        %685 = vmatprep.subr.mxu0 %v649
        %686 = vmatpush1.msra.mxu0 %v648
        %687 = vmatprep.subr.mxu0 %v647
        %688 = vmatpush1.msra.mxu0 %v646
        %689 = vmatprep.subr.mxu0 %v645
        %690 = vmatpush1.msra.mxu0 %v644
        %691 = vmatprep.subr.mxu0 %v643
        %692 = vmatpush1.msra.mxu0 %v642
        %693 = vmatprep.subr.mxu0 %v641
        %694 = vmatpush1.msra.mxu0 %v640
        %695 = vmatprep.subr.mxu0 0.0
        %696 = vmatpush2.msra.mxu0 0.0
        %697 = vmatprep.subr.mxu0 0.0
        %698 = vmatpush2.msra.mxu0 0.0
        %699 = vmatprep.subr.mxu0 0.0
        %700 = vmatpush2.msra.mxu0 0.0
        %701 = vmatprep.subr.mxu0 0.0
        %702 = vmatpush2.msra.mxu0 0.0
        %703 = vmatprep.subr.mxu0 0.0
        %704 = vmatpush2.msra.mxu0 0.0
        %705 = vmatprep.subr.mxu0 0.0
        %706 = vmatpush2.msra.mxu0 0.0
        %707 = vmatprep.subr.mxu0 0.0
        %708 = vmatpush2.msra.mxu0 0.0
        %709 = vmatprep.subr.mxu0 0.0
        %710 = vmatpush2.msra.mxu0 0.0
        %711 = vmatprep.subr.mxu0 0.0
        %712 = vmatpush2.msra.mxu0 0.0
        %713 = vmatprep.subr.mxu0 0.0
        %714 = vmatpush2.msra.mxu0 0.0
        %715 = vmatprep.subr.mxu0 0.0
        %716 = vmatpush2.msra.mxu0 0.0
        %717 = vmatprep.subr.mxu0 0.0
        %718 = vmatpush2.msra.mxu0 0.0
        %719 = vmatprep.subr.mxu0 0.0
        %720 = vmatpush2.msra.mxu0 0.0
        %721 = vmatprep.subr.mxu0 0.0
        %722 = vmatpush2.msra.mxu0 0.0
        %723 = vmatprep.subr.mxu0 0.0
        %724 = vmatpush2.msra.mxu0 0.0
        %725 = vmatprep.subr.mxu0 0.0
        %726 = vmatpush2.msra.mxu0 0.0
        %727 = vmatprep.mubr.f32.mxu0 0.0
        %728 = vmatmul.mubr.f32.gmra.mxu0 %v658
        %v729 = vpop.f32.mrf.mxu0
        %v730 = vadd.f32 0.0, %v729
        %v731 = vpop.f32.mrf.mxu0
        %v732 = vadd.f32 0.0, %v731
        %733 = vmatprep.mubr.f32.mxu0 0.0
        %734 = vmatmul.mubr.f32.gmra.mxu0 %v661
        %v735 = vpop.f32.mrf.mxu0
        %v736 = vadd.f32 0.0, %v735
        %v737 = vpop.f32.mrf.mxu0
        %v738 = vadd.f32 0.0, %v737
        %739 = vdwg.mxu0
        %v741 = vsel %vm656, %v618, 0
        %v744 = vsel %vm656, %v619, 0
        %746 = vmatprep.subr.mxu0 0.0
        %747 = vmatpush1.msra.mxu0 0.0
        %748 = vmatprep.subr.mxu0 0.0
        %749 = vmatpush1.msra.mxu0 0.0
        %750 = vmatprep.subr.mxu0 0.0
        %751 = vmatpush1.msra.mxu0 0.0
        %752 = vmatprep.subr.mxu0 0.0
        %753 = vmatpush1.msra.mxu0 0.0
        %754 = vmatprep.subr.mxu0 0.0
        %755 = vmatpush1.msra.mxu0 0.0
        %756 = vmatprep.subr.mxu0 0.0
        %757 = vmatpush1.msra.mxu0 0.0
        %758 = vmatprep.subr.mxu0 0.0
        %759 = vmatpush1.msra.mxu0 0.0
        %760 = vmatprep.subr.mxu0 0.0
        %761 = vmatpush1.msra.mxu0 0.0
        %762 = vmatprep.subr.mxu0 %v635
        %763 = vmatpush1.msra.mxu0 %v634
        %764 = vmatprep.subr.mxu0 %v633
        %765 = vmatpush1.msra.mxu0 %v632
        %766 = vmatprep.subr.mxu0 %v631
        %767 = vmatpush1.msra.mxu0 %v630
        %768 = vmatprep.subr.mxu0 %v629
        %769 = vmatpush1.msra.mxu0 %v628
        %770 = vmatprep.subr.mxu0 %v627
        %771 = vmatpush1.msra.mxu0 %v626
        %772 = vmatprep.subr.mxu0 %v625
        %773 = vmatpush1.msra.mxu0 %v624
        %774 = vmatprep.subr.mxu0 %v623
        %775 = vmatpush1.msra.mxu0 %v622
        %776 = vmatprep.subr.mxu0 %v621
        %777 = vmatpush1.msra.mxu0 %v620
        %778 = vmatprep.subr.mxu0 0.0
        %779 = vmatpush2.msra.mxu0 0.0
        %780 = vmatprep.subr.mxu0 0.0
        %781 = vmatpush2.msra.mxu0 0.0
        %782 = vmatprep.subr.mxu0 0.0
        %783 = vmatpush2.msra.mxu0 0.0
        %784 = vmatprep.subr.mxu0 0.0
        %785 = vmatpush2.msra.mxu0 0.0
        %786 = vmatprep.subr.mxu0 0.0
        %787 = vmatpush2.msra.mxu0 0.0
        %788 = vmatprep.subr.mxu0 0.0
        %789 = vmatpush2.msra.mxu0 0.0
        %790 = vmatprep.subr.mxu0 0.0
        %791 = vmatpush2.msra.mxu0 0.0
        %792 = vmatprep.subr.mxu0 0.0
        %793 = vmatpush2.msra.mxu0 0.0
        %794 = vmatprep.subr.mxu0 0.0
        %795 = vmatpush2.msra.mxu0 0.0
        %796 = vmatprep.subr.mxu0 0.0
        %797 = vmatpush2.msra.mxu0 0.0
        %798 = vmatprep.subr.mxu0 0.0
        %799 = vmatpush2.msra.mxu0 0.0
        %800 = vmatprep.subr.mxu0 0.0
        %801 = vmatpush2.msra.mxu0 0.0
        %802 = vmatprep.subr.mxu0 0.0
        %803 = vmatpush2.msra.mxu0 0.0
        %804 = vmatprep.subr.mxu0 0.0
        %805 = vmatpush2.msra.mxu0 0.0
        %806 = vmatprep.subr.mxu0 0.0
        %807 = vmatpush2.msra.mxu0 0.0
        %808 = vmatprep.subr.mxu0 0.0
        %809 = vmatpush2.msra.mxu0 0.0
        %810 = vmatprep.mubr.f32.mxu0 0.0
        %811 = vmatmul.mubr.f32.gmra.mxu0 %v741
        %v812 = vpop.f32.mrf.mxu0
        %v813 = vadd.f32 %v730, %v812
        %v814 = vpop.f32.mrf.mxu0
        %v815 = vadd.f32 %v732, %v814
        %816 = vmatprep.mubr.f32.mxu0 0.0
        %817 = vmatmul.mubr.f32.gmra.mxu0 %v744
        %v818 = vpop.f32.mrf.mxu0
        %v819 = vadd.f32 %v736, %v818
        %v820 = vpop.f32.mrf.mxu0
        %v821 = vadd.f32 %v738, %v820
        %822 = vdwg.mxu0
        %s823 = scalar_lea.vmem [#allocation2], 32
        %v824 = vld [vmem:[%s823] sm:$0xff]
        %v825 = vld [vmem:[%s823 + $0x8] sm:$0xff]
        %s826 = scalar_lea.vmem [#allocation9], 256
        %v827 = vld [vmem:[%s826] sm:$0xff]
        %v828 = vld [vmem:[%s826 + $0x8] sm:$0xff]
        %v829 = vld [vmem:[%s826 + $0x10] sm:$0xff]
        %v830 = vld [vmem:[%s826 + $0x18] sm:$0xff]
        %v831 = vld [vmem:[%s826 + $0x20] sm:$0xff]
        %v832 = vld [vmem:[%s826 + $0x28] sm:$0xff]
        %v833 = vld [vmem:[%s826 + $0x30] sm:$0xff]
        %v834 = vld [vmem:[%s826 + $0x38] sm:$0xff]
        %v835 = vld [vmem:[%s826 + $0x40] sm:$0xff]
        %v836 = vld [vmem:[%s826 + $0x48] sm:$0xff]
        %v837 = vld [vmem:[%s826 + $0x50] sm:$0xff]
        %v838 = vld [vmem:[%s826 + $0x58] sm:$0xff]
        %v839 = vld [vmem:[%s826 + $0x60] sm:$0xff]
        %v840 = vld [vmem:[%s826 + $0x68] sm:$0xff]
        %v841 = vld [vmem:[%s826 + $0x70] sm:$0xff]
        %v842 = vld [vmem:[%s826 + $0x78] sm:$0xff]
        %v844 = vsel %vm656, %v824, 0
        %v847 = vsel %vm656, %v825, 0
        %849 = vmatprep.subr.mxu0 0.0
        %850 = vmatpush1.msra.mxu0 0.0
        %851 = vmatprep.subr.mxu0 0.0
        %852 = vmatpush1.msra.mxu0 0.0
        %853 = vmatprep.subr.mxu0 0.0
        %854 = vmatpush1.msra.mxu0 0.0
        %855 = vmatprep.subr.mxu0 0.0
        %856 = vmatpush1.msra.mxu0 0.0
        %857 = vmatprep.subr.mxu0 0.0
        %858 = vmatpush1.msra.mxu0 0.0
        %859 = vmatprep.subr.mxu0 0.0
        %860 = vmatpush1.msra.mxu0 0.0
        %861 = vmatprep.subr.mxu0 0.0
        %862 = vmatpush1.msra.mxu0 0.0
        %863 = vmatprep.subr.mxu0 0.0
        %864 = vmatpush1.msra.mxu0 0.0
        %865 = vmatprep.subr.mxu0 %v842
        %866 = vmatpush1.msra.mxu0 %v841
        %867 = vmatprep.subr.mxu0 %v840
        %868 = vmatpush1.msra.mxu0 %v839
        %869 = vmatprep.subr.mxu0 %v838
        %870 = vmatpush1.msra.mxu0 %v837
        %871 = vmatprep.subr.mxu0 %v836
        %872 = vmatpush1.msra.mxu0 %v835
        %873 = vmatprep.subr.mxu0 %v834
        %874 = vmatpush1.msra.mxu0 %v833
        %875 = vmatprep.subr.mxu0 %v832
        %876 = vmatpush1.msra.mxu0 %v831
        %877 = vmatprep.subr.mxu0 %v830
        %878 = vmatpush1.msra.mxu0 %v829
        %879 = vmatprep.subr.mxu0 %v828
        %880 = vmatpush1.msra.mxu0 %v827
        %881 = vmatprep.subr.mxu0 0.0
        %882 = vmatpush2.msra.mxu0 0.0
        %883 = vmatprep.subr.mxu0 0.0
        %884 = vmatpush2.msra.mxu0 0.0
        %885 = vmatprep.subr.mxu0 0.0
        %886 = vmatpush2.msra.mxu0 0.0
        %887 = vmatprep.subr.mxu0 0.0
        %888 = vmatpush2.msra.mxu0 0.0
        %889 = vmatprep.subr.mxu0 0.0
        %890 = vmatpush2.msra.mxu0 0.0
        %891 = vmatprep.subr.mxu0 0.0
        %892 = vmatpush2.msra.mxu0 0.0
        %893 = vmatprep.subr.mxu0 0.0
        %894 = vmatpush2.msra.mxu0 0.0
        %895 = vmatprep.subr.mxu0 0.0
        %896 = vmatpush2.msra.mxu0 0.0
        %897 = vmatprep.subr.mxu0 0.0
        %898 = vmatpush2.msra.mxu0 0.0
        %899 = vmatprep.subr.mxu0 0.0
        %900 = vmatpush2.msra.mxu0 0.0
        %901 = vmatprep.subr.mxu0 0.0
        %902 = vmatpush2.msra.mxu0 0.0
        %903 = vmatprep.subr.mxu0 0.0
        %904 = vmatpush2.msra.mxu0 0.0
        %905 = vmatprep.subr.mxu0 0.0
        %906 = vmatpush2.msra.mxu0 0.0
        %907 = vmatprep.subr.mxu0 0.0
        %908 = vmatpush2.msra.mxu0 0.0
        %909 = vmatprep.subr.mxu0 0.0
        %910 = vmatpush2.msra.mxu0 0.0
        %911 = vmatprep.subr.mxu0 0.0
        %912 = vmatpush2.msra.mxu0 0.0
        %913 = vmatprep.mubr.f32.mxu0 0.0
        %914 = vmatmul.mubr.f32.gmra.mxu0 %v844
        %v915 = vpop.f32.mrf.mxu0
        %v916 = vadd.f32 0.0, %v915
        %v917 = vpop.f32.mrf.mxu0
        %v918 = vadd.f32 0.0, %v917
        %919 = vmatprep.mubr.f32.mxu0 0.0
        %920 = vmatmul.mubr.f32.gmra.mxu0 %v847
        %v921 = vpop.f32.mrf.mxu0
        %v922 = vadd.f32 0.0, %v921
        %v923 = vpop.f32.mrf.mxu0
        %v924 = vadd.f32 0.0, %v923
        %925 = vdwg.mxu0
        %v926 = vadd.f32 %v813, %v916
        %v927 = vadd.f32 %v815, %v918
        %v928 = vadd.f32 %v819, %v922
        %v929 = vadd.f32 %v821, %v924
        %v930 = vld [vmem:[%s347] sm:$0x3]
        %v932 = vlaneseq
        %v933 = vshrl.u32 %v932, 7
        %v934 = vsub.s32 0, %v933
        %v935 = vrot.slane %v930, %v934
        %v936 = vlaneseq
        %v937 = vshrl.u32 %v936, 7
        %v938 = vsub.s32 1, %v937
        %v939 = vrot.slane %v930, %v938
        %v942 = vadd.f32 %v926, %v935
        %v943 = vadd.f32 %v927, %v939
        %v944 = vadd.f32 %v928, %v935
        %v945 = vadd.f32 %v929, %v939
        %s946 = sld [smem:[#allocation3]]
        %vm947 = vcmp.gt.f32.partialorder %v942, 0.0
        %vm948 = vcmp.gt.f32.partialorder %v943, 0.0
        %vm949 = vcmp.gt.f32.partialorder %v944, 0.0
        %vm950 = vcmp.gt.f32.partialorder %v945, 0.0
        %v951 = vstv %s946
        %v952 = vmul.f32 %v951, %v942
        %v953 = vmul.f32 %v951, %v943
        %v954 = vmul.f32 %v951, %v944
        %v955 = vmul.f32 %v951, %v945
        %v956 = vsel %vm947, %v942, %v952
        %v957 = vsel %vm948, %v943, %v953
        %v958 = vsel %vm949, %v944, %v954
        %v959 = vsel %vm950, %v945, %v955
        %960 = vst [vmem:[%s342] sm:$0xff] %v956
        %961 = vst [vmem:[%s342 + $0x8] sm:$0xff] %v957
        %962 = vst [vmem:[%s342 + $0x10] sm:$0xff] %v958
        %963 = vst [vmem:[%s342 + $0x18] sm:$0xff] %v959
        %s964 = sand.u32 %s182, 1
        %s965 = scalar_lea.sflag [#allocation6], %s964
        %s966 = sand.u32 %s182, 1
        %s967 = smul.addr %s966, 32
        %s968 = scalar_lea.vmem [#allocation10], %s967
        // Predicated region
        $region57: #{tpu_custom_call.1} parent=39 // pred_check
          %p969 = pneg %p192
        $region58: #{tpu_custom_call.1} parent=39 // pred_check_branch
          %971 = sbr.rel (%p969) target = $region60
        $region59: #{tpu_custom_call.1} parent=39 // pred_region
          %s972 = smul.u32 2, %s32
          %s973 = smul.u32 2, %s33
          %s975 = ssub.s32 512, 512
          %976 = vsyncadd %s965, %s975
          %s977 = smul.addr %s972, 2
          %s978 = sadd.s32 %s973, %s977
          %s979 = smul.addr %s31, 8
          %s980 = sadd.s32 %s978, %s979
          %s981 = smul.addr %s980, 128
          %s982 = scalar_lea.hbm %s5, %s981
          %s983 = sshll.u32 %s968, 4
          %s984 = int_to_ptr.vmem [resolvable:$true] %s983
          %989 = dma.vmem_to_hbm [thread:$0]  %s984, 512, %s982, %s965, 256, 256, 16
        $region60: #{tpu_custom_call.1} parent=39 // pred_fallthru
          _
      $region40: #{tpu_custom_call.1} parent=5 // pred_fallthru
        _
      %p990 = scmp.le.s32.totalorder 2, %s21
      // Predicated region
      $region61: #{tpu_custom_call.1} parent=5 // pred_check
        %p991 = pneg %p990
      $region62: #{tpu_custom_call.1} parent=5 // pred_check_branch
        %993 = sbr.rel (%p991) target = $region64
      $region63: #{tpu_custom_call.1} parent=5 // pred_region
        %s994 = ssub.s32 %s21, 2
        // Predicated region
        $region65: #{tpu_custom_call.1} parent=63 // pred_check
          %p995 = pneg %p198
        $region66: #{tpu_custom_call.1} parent=63 // pred_check_branch
          %997 = sbr.rel (%p995) target = $region68
        $region67: #{tpu_custom_call.1} parent=63 // pred_region
          %s998 = sand.u32 %s183, 1
          %s999 = scalar_lea.sflag [#allocation6], %s998
          %s1000 = sand.u32 %s183, 1
          %s1001 = smul.addr %s1000, 32
          %s1002 = scalar_lea.vmem [#allocation10], %s1001
          %1003 = dma.done %s999, 512
        $region68: #{tpu_custom_call.1} parent=63 // pred_fallthru
          _
      $region64: #{tpu_custom_call.1} parent=5 // pred_fallthru
        _
    $region6: #{tpu_custom_call.1} parent=1 // loop_footer
      %s25 = sadd.s32 1, %s21
    $region7: #{tpu_custom_call.1} parent=1 // loop_footer_branch
      %20 = sbr.rel target = $region3
    $region8: #{tpu_custom_call.1} parent=1 // loop_exit
      _
    %1004 = vsyncpa [#allocation5], 1
    %s1005 = scalar_lea.sflag [#allocation5], 1
    %1006 = vsyncpa %s1005, 1
    %1007 = vsyncpa [#allocation8], 1
    %s1008 = scalar_lea.sflag [#allocation8], 1
    %1009 = vsyncpa %s1008, 1
    %1010 = vsyncpa [#allocation6], 1
    %s1011 = scalar_lea.sflag [#allocation6], 1
    %1012 = vsyncpa %s1011, 1

</llo_original>
